<compile_context>
chip_gen: v7x
topology: tpu7x:2x2x1
jax: 0.10.0
libtpu: 0.0.40
codegen_flags: <defaults>
</compile_context>

<pallas_src>
import jax
import jax.numpy as jnp
from jax.experimental import pallas as pl
from jax.experimental.pallas import tpu as pltpu


def _clamp_tile(t_default: int, extent: int, quantum: int) -> int:
    """Largest multiple of `quantum` <= t_default that is <= extent (min quantum)."""
    floor = max(quantum, (extent // quantum) * quantum)
    return min(t_default, floor)


def ff_block_kernel(x_ref, inv_ref, wt_ref, b_ref, o_ref):
    # x tile: (tm, D_in) bf16 (pre-cast in wrapper), W^T tile: (D_in, tn) bf16.
    # MXU matmul with f32 accumulation; deferred per-row normalization:
    #   (x * inv_norm) @ Wt == (x @ Wt) * inv_norm   (inv_norm is a row scalar)
    y = jnp.dot(x_ref[...], wt_ref[...], preferred_element_type=jnp.float32)
    y = y * inv_ref[...] + b_ref[...]
    o_ref[...] = jnp.maximum(y, 0.0).astype(o_ref.dtype)


def ff_block_init_params(w, b):
    """One-time parameter prep (module-init analogue, NOT a per-forward cost):
    pre-transpose the Linear weight and cast to bf16; bias as a (1, D_out) row."""
    wt = jnp.asarray(w.T, dtype=jnp.bfloat16)
    b2 = jnp.asarray(b, dtype=jnp.float32).reshape(1, -1)
    return wt, b2


def ff_block_forward(x, wt, b2, *, tm=256, tn=512,
                     vmem_limit_bytes=48 * 1024 * 1024):
    """
    x  : (B, ...) float32  — flattened to (B, D_in) like x.view(B, -1)
    wt : (D_in, D_out) bfloat16 — pre-transposed Linear weight (enforced bf16)
    b2 : (1, D_out) float32
    returns: (B, D_out) float32
    """
    B = x.shape[0]
    x2 = x.reshape(B, -1).astype(jnp.float32)
    D_in = x2.shape[1]
    D_out = wt.shape[1]
    assert wt.dtype == jnp.bfloat16, "weight must be pre-cast to bf16 at init"
    assert wt.shape[0] == D_in and b2.shape == (1, D_out)

    # One wrapper pass over x: exact f32 per-row inverse norm + bf16 cast of x.
    inv_norm = 1.0 / (jnp.sqrt(jnp.sum(x2 * x2, axis=1, keepdims=True)) + 1e-4)
    x_bf16 = x2.astype(jnp.bfloat16)

    # Tile sizes: multiples of (8, 128), clamped so boundary blocks stay ragged
    # (masked) rather than padded.  Larger tn => fewer x re-reads from HBM.
    tm = _clamp_tile(tm, B, 8)
    tn = _clamp_tile(tn, D_out, 128)

    n_j = pl.cdiv(D_out, tn)   # D_out tiles (outer -> weight tile loaded once)
    n_i = pl.cdiv(B, tm)       # batch tiles (inner -> swept, weight resident)

    cost = pl.CostEstimate(
        flops=2 * B * D_in * D_out,
        transcendentals=0,
        bytes_accessed=(x_bf16.size * 2 * n_j          # x re-streamed per j tile
                        + B * 4 * n_j                   # inv_norm per j tile
                        + wt.size * 2                   # weights once
                        + D_out * 4                     # bias
                        + B * D_out * 4),               # f32 output writeback
    )

    return pl.pallas_call(
        ff_block_kernel,
        out_shape=jax.ShapeDtypeStruct((B, D_out), jnp.float32),
        grid_spec=pltpu.PrefetchScalarGridSpec(
            num_scalar_prefetch=0,
            grid=(n_j, n_i),
            in_specs=[
                pl.BlockSpec((tm, D_in), lambda j, i: (i, 0)),   # x (bf16)
                pl.BlockSpec((tm, 1), lambda j, i: (i, 0)),      # inv_norm
                pl.BlockSpec((D_in, tn), lambda j, i: (0, j)),   # W^T (bf16)
                pl.BlockSpec((1, tn), lambda j, i: (0, j)),      # bias
            ],
            out_specs=pl.BlockSpec((tm, tn), lambda j, i: (i, j)),
        ),
        compiler_params=pltpu.CompilerParams(
            dimension_semantics=("parallel", "parallel"),
            vmem_limit_bytes=vmem_limit_bytes,
        ),
        cost_estimate=cost,
    )(x_bf16, inv_norm, wt, b2)


def _reference(x, w, b):
    # Pure-JAX f32 reference mirroring the PyTorch forward.
    x2 = x.reshape(x.shape[0], -1)
    x_norm = jnp.linalg.norm(x2, axis=1, keepdims=True)
    x_hat = x2 / (x_norm + 1e-4)
    return jnp.maximum(x_hat @ w.T + b, 0.0)


if __name__ == "__main__":
    key = jax.random.PRNGKey(0)
    kx, kw, kb = jax.random.split(key, 3)

    # Small shapes exercising ragged batch and D_out boundary blocks (2x2 grid).
    B, D_in, D_out = 20, 256, 320

    x = jax.random.normal(kx, (B, D_in), dtype=jnp.float32)
    bound = 1.0 / (D_in ** 0.5)
    w = jax.random.uniform(kw, (D_out, D_in), minval=-bound, maxval=bound,
                           dtype=jnp.float32)
    b = jax.random.uniform(kb, (D_out,), minval=-bound, maxval=bound,
                           dtype=jnp.float32)

    # One-time parameter prep (transpose + bf16 cast at module init).
    wt, b2 = ff_block_init_params(w, b)

    out = ff_block_forward(x, wt, b2)
    out = jax.block_until_ready(out)

    ref = _reference(x, w, b)
    assert out.shape == (B, D_out)
    # Tolerance accounts for bf16 MXU operands (activations + weights).
    assert jnp.allclose(out, ref, atol=2e-2, rtol=2e-2), "mismatch vs reference"

    print("KERNEL_OK")
</pallas_src>

<mosaic_0001>
module attributes {stable_mosaic.version = 11 : i64} {
  func.func @ff_block_kernel(%arg0: i32, %arg1: i32, %arg2: memref<16x256xbf16, #tpu.memory_space<vmem>>, %arg3: memref<16x1xf32, #tpu.memory_space<vmem>>, %arg4: memref<256x256xbf16, #tpu.memory_space<vmem>>, %arg5: memref<1x256xf32, #tpu.memory_space<vmem>>, %arg6: memref<16x256xf32, #tpu.memory_space<vmem>>) attributes {dimension_semantics = [#tpu.dimension_semantics<parallel>, #tpu.dimension_semantics<parallel>], iteration_bounds = array<i64: 2, 2>, scalar_prefetch = 0 : i64, scratch_operands = 0 : i64, tpu.core_type = #tpu.core_type<tc>, window_params = [{transform_indices = @transform_0, window_bounds = array<i64: 16, 256>}, {transform_indices = @transform_1, window_bounds = array<i64: 16, 1>}, {transform_indices = @transform_2, window_bounds = array<i64: 256, 256>}, {transform_indices = @transform_3, window_bounds = array<i64: 1, 256>}, {transform_indices = @transform_4, window_bounds = array<i64: 16, 256>}]} {
    %c0 = arith.constant 0 : index
    %c0_0 = arith.constant 0 : index
    %0 = vector.load %arg2[%c0, %c0_0] : memref<16x256xbf16, #tpu.memory_space<vmem>>, vector<16x256xbf16>
    %c0_1 = arith.constant 0 : index
    %c0_2 = arith.constant 0 : index
    %1 = vector.load %arg4[%c0_1, %c0_2] : memref<256x256xbf16, #tpu.memory_space<vmem>>, vector<256x256xbf16>
    %cst = arith.constant dense<0.000000e+00> : vector<16x256xf32>
    %2 = tpu.matmul %0, %1, %cst {dimension_numbers = #tpu.dot_dimension_numbers<[1], [0], [0], [1], [0, 0, 1, 1], [], []>} : vector<16x256xbf16>, vector<256x256xbf16>, vector<16x256xf32> -> vector<16x256xf32>
    %c0_3 = arith.constant 0 : index
    %c0_4 = arith.constant 0 : index
    %3 = vector.load %arg3[%c0_3, %c0_4] : memref<16x1xf32, #tpu.memory_space<vmem>>, vector<16x1xf32>
    %4 = vector.broadcast %3 : vector<16x1xf32> to vector<16x256xf32>
    %5 = arith.mulf %2, %4 : vector<16x256xf32>
    %c0_5 = arith.constant 0 : index
    %c0_6 = arith.constant 0 : index
    %6 = vector.load %arg5[%c0_5, %c0_6] : memref<1x256xf32, #tpu.memory_space<vmem>>, vector<1x256xf32>
    %7 = vector.broadcast %6 : vector<1x256xf32> to vector<16x256xf32>
    %8 = arith.addf %5, %7 : vector<16x256xf32>
    %cst_7 = arith.constant 0.000000e+00 : f32
    %9 = vector.broadcast %cst_7 : f32 to vector<16x256xf32>
    %10 = arith.maximumf %8, %9 : vector<16x256xf32>
    %c0_8 = arith.constant 0 : index
    %c0_9 = arith.constant 0 : index
    %11 = vector.load %arg6[%c0_8, %c0_9] : memref<16x256xf32, #tpu.memory_space<vmem>>, vector<16x256xf32>
    tpu.vector_store %arg6[%c0_8, %c0_9], %10 {strides = array<i32>} : memref<16x256xf32, #tpu.memory_space<vmem>>, vector<16x256xf32>,
    return
  }
  func.func @transform_0(%arg0: i32, %arg1: i32) -> (i32, i32) {
    %c0_i32 = arith.constant 0 : i32
    %c0_i32_0 = arith.constant 0 : i32
    return %arg1, %c0_i32 : i32, i32
  }
  func.func @transform_1(%arg0: i32, %arg1: i32) -> (i32, i32) {
    %c0_i32 = arith.constant 0 : i32
    %c0_i32_0 = arith.constant 0 : i32
    return %arg1, %c0_i32 : i32, i32
  }
  func.func @transform_2(%arg0: i32, %arg1: i32) -> (i32, i32) {
    %c0_i32 = arith.constant 0 : i32
    %c0_i32_0 = arith.constant 0 : i32
    return %c0_i32, %arg0 : i32, i32
  }
  func.func @transform_3(%arg0: i32, %arg1: i32) -> (i32, i32) {
    %c0_i32 = arith.constant 0 : i32
    %c0_i32_0 = arith.constant 0 : i32
    return %c0_i32, %arg0 : i32, i32
  }
  func.func @transform_4(%arg0: i32, %arg1: i32) -> (i32, i32) {
    %c0_i32 = arith.constant 0 : i32
    return %arg1, %arg0 : i32, i32
  }
}

</mosaic_0001>

<llo_original>
// kernel: tpu_custom_call.1
$region0: #{tpu_custom_call.1}
  #allocation0 [shape = 'u32[]', space=smem, size = 0x4, offset = 0x4, fixed_abs, tag = 'smem constant byte address 0x4 - core index']
  #allocation1 [shape = 'u32[144,128]{1,0:T(1,128)}', space=vmem, size = 0x12000, scoped, tag = 'internal scratch']
  %s0 = inlined_call_operand.vmem [shape: bf16[20,256], index: 0, kind: input, shape index: {}]
  %s1 = inlined_call_operand.vmem [shape: f32[20,1], index: 1, kind: input, shape index: {}]
  %s2 = inlined_call_operand.vmem [shape: bf16[256,320], index: 2, kind: input, shape index: {}]
  %s3 = inlined_call_operand.vmem [shape: f32[1,320], index: 3, kind: input, shape index: {}]
  %s4 = inlined_call_operand.hbm [shape: f32[20,320], index: 4, kind: output, shape index: {}]
  %s5 = sld [smem:[#allocation0]]
  $region115: #{tpu_custom_call.1} parent=0
    _
  %s7 = ssub.s32 1, %s5
  %s8 = scalar_select 0, %s7, %s5
  $region1: #{tpu_custom_call.1} parent=0
    #allocation2 [shape = 'u8[262144]{0}', space=vmem, size = 0x40000, scoped, tag = 'input window, operand 2']
    #allocation3 [shape = 'u8[32768]{0}', space=vmem, size = 0x8000, scoped, tag = 'output window, operand 0']
    #allocation4 [shape = 's32[2]{0}', space=sflag, size = 0x8, scoped, tag = 'scoped memory for tpu_custom_call.1']
    %9 = vsyncpa [#allocation4], 0
    %s10 = scalar_lea.sflag [#allocation4], 1
    %11 = vsyncpa %s10, 0
    loop: start=0, step=1, limit=6
    $region2: #{tpu_custom_call.1} parent=1 // loop_pre_header
      _
    $region3: #{tpu_custom_call.1} parent=1 // loop_header
      %s13 = sphi 0, %s17
      %p14 = scmp.ge.s32.totalorder %s13, 6
      %s20 = sphi 0, %s32
      %s21 = sphi 0, %s28
      %s22 = sphi 0, %s20
      %s23 = sphi 0, %s21
      %s24 = sphi 0, %s22
      %s25 = sphi 0, %s23
      %s35 = sphi 0, %s37
      %s38 = sphi 0, %s35
      %s39 = sphi 0, %s38
      %s55 = sphi 0, %s39
      %s61 = sphi 0, %s63
      %s64 = sphi 0, %s61
      %s65 = sphi 0, %s64
      %s81 = sphi 0, %s65
      %s87 = sphi 0, %s89
      %s90 = sphi 0, %s87
      %s91 = sphi 0, %s90
      %s107 = sphi 0, %s91
      %s113 = sphi 0, %s115
      %s116 = sphi 0, %s113
      %s117 = sphi 0, %s116
      %s133 = sphi 0, %s117
      %s141 = sphi 0, %s143
      %s144 = sphi 0, %s141
      %s145 = sphi 0, %s144
      %s161 = sphi 0, %s145
    $region4: #{tpu_custom_call.1} parent=1 // loop_header_branch
      %16 = sbr.rel (%p14) target = $region8
    $region5: #{tpu_custom_call.1} parent=1 // loop_body
      %s18 = ssub.s32 %s13, 1
      %s19 = ssub.s32 %s13, 2
      %s26 = sadd.s32 1, %s21
      %p27 = scmp.ge.s32.totalorder %s26, 2
      %s28 = scalar_select %p27, 0, %s26
      %s29 = sadd.s32 1, %s20
      %s30 = scalar_select %p27, %s29, %s20
      %p31 = scmp.ge.s32.totalorder %s30, 2
      %s32 = scalar_select %p31, 0, %s30
      %s33 = ssub.s32 %s21, %s28
      %p34 = scmp.eq.s32.totalorder %s33, 0
      %s36 = sadd.s32 %s35, 1
      %s37 = scalar_select %p34, %s35, %s36
      %p40 = pneg %p34
      %p41 = scmp.eq.s32.totalorder %s13, 3
      %p42 = por %p40, %p41
      %p43 = scmp.ne.s32.totalorder %s35, %s38
      %p44 = scmp.eq.s32.totalorder %s13, 0
      %p45 = por %p43, %p44
      %p46 = scmp.ne.s32.totalorder %s35, %s38
      %p47 = scmp.eq.s32.totalorder %s18, 3
      %p48 = por %p46, %p47
      %p49 = scmp.ne.s32.totalorder %s38, %s39
      %p50 = scmp.eq.s32.totalorder %s18, 0
      %p51 = por %p49, %p50
      %p52 = scmp.ne.s32.totalorder %s38, %s39
      %p53 = scmp.eq.s32.totalorder %s19, 3
      %p54 = por %p52, %p53
      %p56 = scmp.ne.s32.totalorder %s39, %s55
      %p57 = scmp.eq.s32.totalorder %s19, 0
      %p58 = por %p56, %p57
      %s59 = ssub.s32 %s21, %s28
      %p60 = scmp.eq.s32.totalorder %s59, 0
      %s62 = sadd.s32 %s61, 1
      %s63 = scalar_select %p60, %s61, %s62
      %p66 = pneg %p60
      %p67 = scmp.eq.s32.totalorder %s13, 3
      %p68 = por %p66, %p67
      %p69 = scmp.ne.s32.totalorder %s61, %s64
      %p70 = scmp.eq.s32.totalorder %s13, 0
      %p71 = por %p69, %p70
      %p72 = scmp.ne.s32.totalorder %s61, %s64
      %p73 = scmp.eq.s32.totalorder %s18, 3
      %p74 = por %p72, %p73
      %p75 = scmp.ne.s32.totalorder %s64, %s65
      %p76 = scmp.eq.s32.totalorder %s18, 0
      %p77 = por %p75, %p76
      %p78 = scmp.ne.s32.totalorder %s64, %s65
      %p79 = scmp.eq.s32.totalorder %s19, 3
      %p80 = por %p78, %p79
      %p82 = scmp.ne.s32.totalorder %s65, %s81
      %p83 = scmp.eq.s32.totalorder %s19, 0
      %p84 = por %p82, %p83
      %s85 = ssub.s32 %s20, %s32
      %p86 = scmp.eq.s32.totalorder %s85, 0
      %s88 = sadd.s32 %s87, 1
      %s89 = scalar_select %p86, %s87, %s88
      %p92 = pneg %p86
      %p93 = scmp.eq.s32.totalorder %s13, 3
      %p94 = por %p92, %p93
      %p95 = scmp.ne.s32.totalorder %s87, %s90
      %p96 = scmp.eq.s32.totalorder %s13, 0
      %p97 = por %p95, %p96
      %p98 = scmp.ne.s32.totalorder %s87, %s90
      %p99 = scmp.eq.s32.totalorder %s18, 3
      %p100 = por %p98, %p99
      %p101 = scmp.ne.s32.totalorder %s90, %s91
      %p102 = scmp.eq.s32.totalorder %s18, 0
      %p103 = por %p101, %p102
      %p104 = scmp.ne.s32.totalorder %s90, %s91
      %p105 = scmp.eq.s32.totalorder %s19, 3
      %p106 = por %p104, %p105
      %p108 = scmp.ne.s32.totalorder %s91, %s107
      %p109 = scmp.eq.s32.totalorder %s19, 0
      %p110 = por %p108, %p109
      %s111 = ssub.s32 %s20, %s32
      %p112 = scmp.eq.s32.totalorder %s111, 0
      %s114 = sadd.s32 %s113, 1
      %s115 = scalar_select %p112, %s113, %s114
      %p118 = pneg %p112
      %p119 = scmp.eq.s32.totalorder %s13, 3
      %p120 = por %p118, %p119
      %p121 = scmp.ne.s32.totalorder %s113, %s116
      %p122 = scmp.eq.s32.totalorder %s13, 0
      %p123 = por %p121, %p122
      %p124 = scmp.ne.s32.totalorder %s113, %s116
      %p125 = scmp.eq.s32.totalorder %s18, 3
      %p126 = por %p124, %p125
      %p127 = scmp.ne.s32.totalorder %s116, %s117
      %p128 = scmp.eq.s32.totalorder %s18, 0
      %p129 = por %p127, %p128
      %p130 = scmp.ne.s32.totalorder %s116, %s117
      %p131 = scmp.eq.s32.totalorder %s19, 3
      %p132 = por %p130, %p131
      %p134 = scmp.ne.s32.totalorder %s117, %s133
      %p135 = scmp.eq.s32.totalorder %s19, 0
      %p136 = por %p134, %p135
      %s137 = ssub.s32 %s21, %s28
      %s138 = ssub.s32 %s20, %s32
      %s139 = sor.u32 %s137, %s138
      %p140 = scmp.eq.s32.totalorder %s139, 0
      %s142 = sadd.s32 %s141, 1
      %s143 = scalar_select %p140, %s141, %s142
      %p146 = pneg %p140
      %p147 = scmp.eq.s32.totalorder %s13, 3
      %p148 = por %p146, %p147
      %p149 = scmp.ne.s32.totalorder %s141, %s144
      %p150 = scmp.eq.s32.totalorder %s13, 0
      %p151 = por %p149, %p150
      %p152 = scmp.ne.s32.totalorder %s141, %s144
      %p153 = scmp.eq.s32.totalorder %s18, 3
      %p154 = por %p152, %p153
      %p155 = scmp.ne.s32.totalorder %s144, %s145
      %p156 = scmp.eq.s32.totalorder %s18, 0
      %p157 = por %p155, %p156
      %p158 = scmp.ne.s32.totalorder %s144, %s145
      %p159 = scmp.eq.s32.totalorder %s19, 3
      %p160 = por %p158, %p159
      %p162 = scmp.ne.s32.totalorder %s145, %s161
      %p163 = scmp.eq.s32.totalorder %s19, 0
      %p164 = por %p162, %p163
      %p165 = scmp.le.s32.totalorder 1, %s13
      %p166 = scmp.lt.s32.totalorder %s13, 5
      %p167 = pnand %p165, %p166
      %p168 = pneg %p167
      // Predicated region
      $region9: #{tpu_custom_call.1} parent=5 // pred_check
        _
      $region10: #{tpu_custom_call.1} parent=5 // pred_check_branch
        %170 = sbr.rel (%p167) target = $region12
      $region11: #{tpu_custom_call.1} parent=5 // pred_region
        %s171 = ssub.s32 %s13, 1
      $region12: #{tpu_custom_call.1} parent=5 // pred_fallthru
        _
      %p172 = scmp.lt.s32.totalorder %s13, 4
      // Predicated region
      $region13: #{tpu_custom_call.1} parent=5 // pred_check
        %p173 = pneg %p172
      $region14: #{tpu_custom_call.1} parent=5 // pred_check_branch
        %175 = sbr.rel (%p173) target = $region16
      $region15: #{tpu_custom_call.1} parent=5 // pred_region
        // Predicated region
        $region17: #{tpu_custom_call.1} parent=15 // pred_check
          %p176 = pneg %p45
        $region18: #{tpu_custom_call.1} parent=15 // pred_check_branch
          %178 = sbr.rel (%p176) target = $region20
        $region19: #{tpu_custom_call.1} parent=15 // pred_region
          %s179 = smul.u32 2, %s21
          %s180 = ssub.s32 3, %s179
          %p181 = scmp.lt.s32.totalorder %s180, 2
          %s182 = scalar_select %p181, %s180, 2
          %s183 = smul.u32 64, %s182
          %s184 = smul.u32 %s183, 2
          %p185 = scmp.lt.s32.totalorder %s179, 2
          %s186 = scalar_select %p185, %s179, 2
          %s187 = smul.addr %s186, 2
          %s188 = smul.addr %s187, 4
          %s189 = scalar_lea.vmem %s0, %s188
          %s190 = smul.u32 2, %s21
          %s191 = ssub.s32 3, %s190
          %p192 = scmp.lt.s32.totalorder %s191, 2
          %s193 = scalar_select %p192, %s191, 2
          %s194 = smul.u32 64, %s193
          %s195 = smul.u32 %s194, 2
        $region20: #{tpu_custom_call.1} parent=15 // pred_fallthru
          _
        // Predicated region
        $region21: #{tpu_custom_call.1} parent=15 // pred_check
          %p196 = pneg %p71
        $region22: #{tpu_custom_call.1} parent=15 // pred_check_branch
          %198 = sbr.rel (%p196) target = $region24
        $region23: #{tpu_custom_call.1} parent=15 // pred_region
          %s199 = smul.u32 2, %s21
          %s200 = ssub.s32 3, %s199
          %p201 = scmp.lt.s32.totalorder %s200, 2
          %s202 = scalar_select %p201, %s200, 2
          %s203 = smul.u32 128, %s202
          %p204 = scmp.lt.s32.totalorder %s199, 2
          %s205 = scalar_select %p204, %s199, 2
          %s206 = smul.addr %s205, 8
          %s207 = scalar_lea.vmem %s1, %s206
          %s208 = smul.u32 2, %s21
          %s209 = ssub.s32 3, %s208
          %p210 = scmp.lt.s32.totalorder %s209, 2
          %s211 = scalar_select %p210, %s209, 2
          %s212 = smul.u32 128, %s211
        $region24: #{tpu_custom_call.1} parent=15 // pred_fallthru
          _
        // Predicated region
        $region25: #{tpu_custom_call.1} parent=15 // pred_check
          %p213 = pneg %p97
        $region26: #{tpu_custom_call.1} parent=15 // pred_check_branch
          %215 = sbr.rel (%p213) target = $region28
        $region27: #{tpu_custom_call.1} parent=15 // pred_region
          %s216 = sand.u32 %s87, 1
          %s217 = sand.u32 %s87, 1
          %s218 = smul.addr %s217, 256
          %s219 = scalar_lea.vmem [#allocation2], %s218
          %s220 = smul.u32 2, %s20
          %s221 = ssub.s32 3, %s220
          %p222 = scmp.lt.s32.totalorder %s221, 2
          %s223 = scalar_select %p222, %s221, 2
          %s224 = smul.u32 2048, %s223
          %p225 = scmp.ne.s32.totalorder 0, %s224
          %s226 = smul.addr %s220, 4
          %s227 = scalar_lea.vmem %s2, %s226
          %s228 = smul.u32 %s223, 4
          // Predicated region
          $region29: #{tpu_custom_call.1} parent=27 // pred_check
            %p229 = pneg %p225
          $region30: #{tpu_custom_call.1} parent=27 // pred_check_branch
            %231 = sbr.rel (%p229) target = $region32
          $region31: #{tpu_custom_call.1} parent=27 // pred_region
            %p232 = scmp.lt.u32.totalorder %s228, 8
            %p233 = pneg %p232
            // Predicated region
            $region33: #{tpu_custom_call.1} parent=31 // pred_check
              _
            $region34: #{tpu_custom_call.1} parent=31 // pred_check_branch
              %235 = sbr.rel (%p232) target = $region36
            $region35: #{tpu_custom_call.1} parent=31 // pred_region
              %s312 = sand.u32 %s228, 7
              %p313 = scmp.eq.s32.totalorder %s312, 0
              // Predicated region
              $region48: #{tpu_custom_call.1} parent=35 // pred_check
                %p314 = pneg %p313
              $region49: #{tpu_custom_call.1} parent=35 // pred_check_branch
                %316 = sbr.rel (%p314) target = $region51
              $region50: #{tpu_custom_call.1} parent=35 // pred_region
                %s317 = sshrl.u32 %s228, 3
                %s318 = sshrl.u32 %s317, 1
                // While loop
                $region52: #{tpu_custom_call.1} parent=50 // loop_pre_header
                  _
                $region53: #{tpu_custom_call.1} parent=50 // loop_header
                  %s322 = sphi 0, %s324
                  %p323 = scmp.ge.s32.totalorder %s322, %s318
                  %s327 = sphi 0, %s460
                  %s328 = sphi %s227, %s463
                  %s329 = sphi %s219, %s464
                $region54: #{tpu_custom_call.1} parent=50 // loop_header_branch
                  %326 = sbr.rel (%p323) target = $region58
                $region55: #{tpu_custom_call.1} parent=50 // loop_body
                  %v330 = vld [vmem:[%s328] sm:$0xff]
                  %331 = vst [vmem:[%s329] sm:$0xff] %v330
                  %v332 = vld [vmem:[%s328 + $0x8] sm:$0xff]
                  %333 = vst [vmem:[%s329 + $0x8] sm:$0xff] %v332
                  %v334 = vld [vmem:[%s328 + $0xc] sm:$0xff]
                  %335 = vst [vmem:[%s329 + $0x8] sm:$0xff] %v334
                  %v336 = vld [vmem:[%s328 + $0x14] sm:$0xff]
                  %337 = vst [vmem:[%s329 + $0x10] sm:$0xff] %v336
                  %v338 = vld [vmem:[%s328 + $0x18] sm:$0xff]
                  %339 = vst [vmem:[%s329 + $0x10] sm:$0xff] %v338
                  %v340 = vld [vmem:[%s328 + $0x20] sm:$0xff]
                  %341 = vst [vmem:[%s329 + $0x18] sm:$0xff] %v340
                  %v342 = vld [vmem:[%s328 + $0x24] sm:$0xff]
                  %343 = vst [vmem:[%s329 + $0x18] sm:$0xff] %v342
                  %v344 = vld [vmem:[%s328 + $0x2c] sm:$0xff]
                  %345 = vst [vmem:[%s329 + $0x20] sm:$0xff] %v344
                  %v346 = vld [vmem:[%s328 + $0x30] sm:$0xff]
                  %347 = vst [vmem:[%s329 + $0x20] sm:$0xff] %v346
                  %v348 = vld [vmem:[%s328 + $0x38] sm:$0xff]
                  %349 = vst [vmem:[%s329 + $0x28] sm:$0xff] %v348
                  %v350 = vld [vmem:[%s328 + $0x3c] sm:$0xff]
                  %351 = vst [vmem:[%s329 + $0x28] sm:$0xff] %v350
                  %v352 = vld [vmem:[%s328 + $0x44] sm:$0xff]
                  %353 = vst [vmem:[%s329 + $0x30] sm:$0xff] %v352
                  %v354 = vld [vmem:[%s328 + $0x48] sm:$0xff]
                  %355 = vst [vmem:[%s329 + $0x30] sm:$0xff] %v354
                  %v356 = vld [vmem:[%s328 + $0x50] sm:$0xff]
                  %357 = vst [vmem:[%s329 + $0x38] sm:$0xff] %v356
                  %v358 = vld [vmem:[%s328 + $0x54] sm:$0xff]
                  %359 = vst [vmem:[%s329 + $0x38] sm:$0xff] %v358
                  %v360 = vld [vmem:[%s328 + $0x5c] sm:$0xff]
                  %361 = vst [vmem:[%s329 + $0x40] sm:$0xff] %v360
                  %v362 = vld [vmem:[%s328 + $0x60] sm:$0xff]
                  %363 = vst [vmem:[%s329 + $0x40] sm:$0xff] %v362
                  %v364 = vld [vmem:[%s328 + $0x68] sm:$0xff]
                  %365 = vst [vmem:[%s329 + $0x48] sm:$0xff] %v364
                  %v366 = vld [vmem:[%s328 + $0x6c] sm:$0xff]
                  %367 = vst [vmem:[%s329 + $0x48] sm:$0xff] %v366
                  %v368 = vld [vmem:[%s328 + $0x74] sm:$0xff]
                  %369 = vst [vmem:[%s329 + $0x50] sm:$0xff] %v368
                  %v370 = vld [vmem:[%s328 + $0x78] sm:$0xff]
                  %371 = vst [vmem:[%s329 + $0x50] sm:$0xff] %v370
                  %v372 = vld [vmem:[%s328 + $0x80] sm:$0xff]
                  %373 = vst [vmem:[%s329 + $0x58] sm:$0xff] %v372
                  %v374 = vld [vmem:[%s328 + $0x84] sm:$0xff]
                  %375 = vst [vmem:[%s329 + $0x58] sm:$0xff] %v374
                  %v376 = vld [vmem:[%s328 + $0x8c] sm:$0xff]
                  %377 = vst [vmem:[%s329 + $0x60] sm:$0xff] %v376
                  %v378 = vld [vmem:[%s328 + $0x90] sm:$0xff]
                  %379 = vst [vmem:[%s329 + $0x60] sm:$0xff] %v378
                  %v380 = vld [vmem:[%s328 + $0x98] sm:$0xff]
                  %381 = vst [vmem:[%s329 + $0x68] sm:$0xff] %v380
                  %v382 = vld [vmem:[%s328 + $0x9c] sm:$0xff]
                  %383 = vst [vmem:[%s329 + $0x68] sm:$0xff] %v382
                  %v384 = vld [vmem:[%s328 + $0xa4] sm:$0xff]
                  %385 = vst [vmem:[%s329 + $0x70] sm:$0xff] %v384
                  %v386 = vld [vmem:[%s328 + $0xa8] sm:$0xff]
                  %387 = vst [vmem:[%s329 + $0x70] sm:$0xff] %v386
                  %v388 = vld [vmem:[%s328 + $0xb0] sm:$0xff]
                  %389 = vst [vmem:[%s329 + $0x78] sm:$0xff] %v388
                  %v390 = vld [vmem:[%s328 + $0xb4] sm:$0xff]
                  %391 = vst [vmem:[%s329 + $0x78] sm:$0xff] %v390
                  %v392 = vld [vmem:[%s328 + $0xbc] sm:$0xff]
                  %393 = vst [vmem:[%s329 + $0x80] sm:$0xff] %v392
                  %v394 = vld [vmem:[%s328 + $0xc0] sm:$0xff]
                  %395 = vst [vmem:[%s329 + $0x80] sm:$0xff] %v394
                  %v396 = vld [vmem:[%s328 + $0xc8] sm:$0xff]
                  %397 = vst [vmem:[%s329 + $0x88] sm:$0xff] %v396
                  %v398 = vld [vmem:[%s328 + $0xcc] sm:$0xff]
                  %399 = vst [vmem:[%s329 + $0x88] sm:$0xff] %v398
                  %v400 = vld [vmem:[%s328 + $0xd4] sm:$0xff]
                  %401 = vst [vmem:[%s329 + $0x90] sm:$0xff] %v400
                  %v402 = vld [vmem:[%s328 + $0xd8] sm:$0xff]
                  %403 = vst [vmem:[%s329 + $0x90] sm:$0xff] %v402
                  %v404 = vld [vmem:[%s328 + $0xe0] sm:$0xff]
                  %405 = vst [vmem:[%s329 + $0x98] sm:$0xff] %v404
                  %v406 = vld [vmem:[%s328 + $0xe4] sm:$0xff]
                  %407 = vst [vmem:[%s329 + $0x98] sm:$0xff] %v406
                  %v408 = vld [vmem:[%s328 + $0xec] sm:$0xff]
                  %409 = vst [vmem:[%s329 + $0xa0] sm:$0xff] %v408
                  %v410 = vld [vmem:[%s328 + $0xf0] sm:$0xff]
                  %411 = vst [vmem:[%s329 + $0xa0] sm:$0xff] %v410
                  %v412 = vld [vmem:[%s328 + $0xf8] sm:$0xff]
                  %413 = vst [vmem:[%s329 + $0xa8] sm:$0xff] %v412
                  %v414 = vld [vmem:[%s328 + $0xfc] sm:$0xff]
                  %415 = vst [vmem:[%s329 + $0xa8] sm:$0xff] %v414
                  %v416 = vld [vmem:[%s328 + $0x104] sm:$0xff]
                  %417 = vst [vmem:[%s329 + $0xb0] sm:$0xff] %v416
                  %v418 = vld [vmem:[%s328 + $0x108] sm:$0xff]
                  %419 = vst [vmem:[%s329 + $0xb0] sm:$0xff] %v418
                  %v420 = vld [vmem:[%s328 + $0x110] sm:$0xff]
                  %421 = vst [vmem:[%s329 + $0xb8] sm:$0xff] %v420
                  %v422 = vld [vmem:[%s328 + $0x114] sm:$0xff]
                  %423 = vst [vmem:[%s329 + $0xb8] sm:$0xff] %v422
                  %v424 = vld [vmem:[%s328 + $0x11c] sm:$0xff]
                  %425 = vst [vmem:[%s329 + $0xc0] sm:$0xff] %v424
                  %v426 = vld [vmem:[%s328 + $0x120] sm:$0xff]
                  %427 = vst [vmem:[%s329 + $0xc0] sm:$0xff] %v426
                  %v428 = vld [vmem:[%s328 + $0x128] sm:$0xff]
                  %429 = vst [vmem:[%s329 + $0xc8] sm:$0xff] %v428
                  %v430 = vld [vmem:[%s328 + $0x12c] sm:$0xff]
                  %431 = vst [vmem:[%s329 + $0xc8] sm:$0xff] %v430
                  %v432 = vld [vmem:[%s328 + $0x134] sm:$0xff]
                  %433 = vst [vmem:[%s329 + $0xd0] sm:$0xff] %v432
                  %v434 = vld [vmem:[%s328 + $0x138] sm:$0xff]
                  %435 = vst [vmem:[%s329 + $0xd0] sm:$0xff] %v434
                  %v436 = vld [vmem:[%s328 + $0x140] sm:$0xff]
                  %437 = vst [vmem:[%s329 + $0xd8] sm:$0xff] %v436
                  %v438 = vld [vmem:[%s328 + $0x144] sm:$0xff]
                  %439 = vst [vmem:[%s329 + $0xd8] sm:$0xff] %v438
                  %v440 = vld [vmem:[%s328 + $0x14c] sm:$0xff]
                  %441 = vst [vmem:[%s329 + $0xe0] sm:$0xff] %v440
                  %v442 = vld [vmem:[%s328 + $0x150] sm:$0xff]
                  %443 = vst [vmem:[%s329 + $0xe0] sm:$0xff] %v442
                  %v444 = vld [vmem:[%s328 + $0x158] sm:$0xff]
                  %445 = vst [vmem:[%s329 + $0xe8] sm:$0xff] %v444
                  %v446 = vld [vmem:[%s328 + $0x15c] sm:$0xff]
                  %447 = vst [vmem:[%s329 + $0xe8] sm:$0xff] %v446
                  %v448 = vld [vmem:[%s328 + $0x164] sm:$0xff]
                  %449 = vst [vmem:[%s329 + $0xf0] sm:$0xff] %v448
                  %v450 = vld [vmem:[%s328 + $0x168] sm:$0xff]
                  %451 = vst [vmem:[%s329 + $0xf0] sm:$0xff] %v450
                  %v452 = vld [vmem:[%s328 + $0x170] sm:$0xff]
                  %453 = vst [vmem:[%s329 + $0xf8] sm:$0xff] %v452
                  %v454 = vld [vmem:[%s328 + $0x174] sm:$0xff]
                  %455 = vst [vmem:[%s329 + $0xf8] sm:$0xff] %v454
                  %v456 = vld [vmem:[%s328 + $0x17c] sm:$0xff]
                  %457 = vst [vmem:[%s329 + $0x100] sm:$0xff] %v456
                  %s458 = sadd.s32 1, %s327
                  %p459 = scmp.ge.s32.totalorder %s458, %s318
                  %s460 = scalar_select %p459, 0, %s458
                  %s461 = smul.u32 %s460, 16
                  %s462 = smul.u32 %s460, 16
                  %s463 = scalar_lea.vmem %s227, %s461
                  %s464 = scalar_lea.vmem %s219, %s462 [#allocation2]
                $region56: #{tpu_custom_call.1} parent=50 // loop_footer
                  %s324 = sadd.s32 %s322, 1
                $region57: #{tpu_custom_call.1} parent=50 // loop_footer_branch
                  %321 = sbr.rel target = $region53
                $region58: #{tpu_custom_call.1} parent=50 // loop_exit
                  _
                %s465 = sshrl.u32 %s317, 1
                %s466 = sand.u32 %s317, 1
                %s467 = smul.u32 %s465, 2
                %s468 = smul.u32 128, %s467
                %s469 = sshra.s32 %s468, 4
                %s470 = scalar_lea.vmem %s227, %s469
                %s471 = smul.u32 128, %s467
                %s472 = sshra.s32 %s471, 4
                %s473 = scalar_lea.vmem %s219, %s472 [#allocation2]
                // While loop
                $region59: #{tpu_custom_call.1} parent=50 // loop_pre_header
                  _
                $region60: #{tpu_custom_call.1} parent=50 // loop_header
                  %s477 = sphi 0, %s479
                  %p478 = scmp.ge.s32.totalorder %s477, %s466
                  %s482 = sphi 0, %s551
                  %s483 = sphi %s470, %s554
                  %s484 = sphi %s473, %s555
                $region61: #{tpu_custom_call.1} parent=50 // loop_header_branch
                  %481 = sbr.rel (%p478) target = $region65
                $region62: #{tpu_custom_call.1} parent=50 // loop_body
                  %v485 = vld [vmem:[%s483] sm:$0xff]
                  %486 = vst [vmem:[%s484] sm:$0xff] %v485
                  %v487 = vld [vmem:[%s483 + $0xc] sm:$0xff]
                  %488 = vst [vmem:[%s484 + $0x8] sm:$0xff] %v487
                  %v489 = vld [vmem:[%s483 + $0x18] sm:$0xff]
                  %490 = vst [vmem:[%s484 + $0x10] sm:$0xff] %v489
                  %v491 = vld [vmem:[%s483 + $0x24] sm:$0xff]
                  %492 = vst [vmem:[%s484 + $0x18] sm:$0xff] %v491
                  %v493 = vld [vmem:[%s483 + $0x30] sm:$0xff]
                  %494 = vst [vmem:[%s484 + $0x20] sm:$0xff] %v493
                  %v495 = vld [vmem:[%s483 + $0x3c] sm:$0xff]
                  %496 = vst [vmem:[%s484 + $0x28] sm:$0xff] %v495
                  %v497 = vld [vmem:[%s483 + $0x48] sm:$0xff]
                  %498 = vst [vmem:[%s484 + $0x30] sm:$0xff] %v497
                  %v499 = vld [vmem:[%s483 + $0x54] sm:$0xff]
                  %500 = vst [vmem:[%s484 + $0x38] sm:$0xff] %v499
                  %v501 = vld [vmem:[%s483 + $0x60] sm:$0xff]
                  %502 = vst [vmem:[%s484 + $0x40] sm:$0xff] %v501
                  %v503 = vld [vmem:[%s483 + $0x6c] sm:$0xff]
                  %504 = vst [vmem:[%s484 + $0x48] sm:$0xff] %v503
                  %v505 = vld [vmem:[%s483 + $0x78] sm:$0xff]
                  %506 = vst [vmem:[%s484 + $0x50] sm:$0xff] %v505
                  %v507 = vld [vmem:[%s483 + $0x84] sm:$0xff]
                  %508 = vst [vmem:[%s484 + $0x58] sm:$0xff] %v507
                  %v509 = vld [vmem:[%s483 + $0x90] sm:$0xff]
                  %510 = vst [vmem:[%s484 + $0x60] sm:$0xff] %v509
                  %v511 = vld [vmem:[%s483 + $0x9c] sm:$0xff]
                  %512 = vst [vmem:[%s484 + $0x68] sm:$0xff] %v511
                  %v513 = vld [vmem:[%s483 + $0xa8] sm:$0xff]
                  %514 = vst [vmem:[%s484 + $0x70] sm:$0xff] %v513
                  %v515 = vld [vmem:[%s483 + $0xb4] sm:$0xff]
                  %516 = vst [vmem:[%s484 + $0x78] sm:$0xff] %v515
                  %v517 = vld [vmem:[%s483 + $0xc0] sm:$0xff]
                  %518 = vst [vmem:[%s484 + $0x80] sm:$0xff] %v517
                  %v519 = vld [vmem:[%s483 + $0xcc] sm:$0xff]
                  %520 = vst [vmem:[%s484 + $0x88] sm:$0xff] %v519
                  %v521 = vld [vmem:[%s483 + $0xd8] sm:$0xff]
                  %522 = vst [vmem:[%s484 + $0x90] sm:$0xff] %v521
                  %v523 = vld [vmem:[%s483 + $0xe4] sm:$0xff]
                  %524 = vst [vmem:[%s484 + $0x98] sm:$0xff] %v523
                  %v525 = vld [vmem:[%s483 + $0xf0] sm:$0xff]
                  %526 = vst [vmem:[%s484 + $0xa0] sm:$0xff] %v525
                  %v527 = vld [vmem:[%s483 + $0xfc] sm:$0xff]
                  %528 = vst [vmem:[%s484 + $0xa8] sm:$0xff] %v527
                  %v529 = vld [vmem:[%s483 + $0x108] sm:$0xff]
                  %530 = vst [vmem:[%s484 + $0xb0] sm:$0xff] %v529
                  %v531 = vld [vmem:[%s483 + $0x114] sm:$0xff]
                  %532 = vst [vmem:[%s484 + $0xb8] sm:$0xff] %v531
                  %v533 = vld [vmem:[%s483 + $0x120] sm:$0xff]
                  %534 = vst [vmem:[%s484 + $0xc0] sm:$0xff] %v533
                  %v535 = vld [vmem:[%s483 + $0x12c] sm:$0xff]
                  %536 = vst [vmem:[%s484 + $0xc8] sm:$0xff] %v535
                  %v537 = vld [vmem:[%s483 + $0x138] sm:$0xff]
                  %538 = vst [vmem:[%s484 + $0xd0] sm:$0xff] %v537
                  %v539 = vld [vmem:[%s483 + $0x144] sm:$0xff]
                  %540 = vst [vmem:[%s484 + $0xd8] sm:$0xff] %v539
                  %v541 = vld [vmem:[%s483 + $0x150] sm:$0xff]
                  %542 = vst [vmem:[%s484 + $0xe0] sm:$0xff] %v541
                  %v543 = vld [vmem:[%s483 + $0x15c] sm:$0xff]
                  %544 = vst [vmem:[%s484 + $0xe8] sm:$0xff] %v543
                  %v545 = vld [vmem:[%s483 + $0x168] sm:$0xff]
                  %546 = vst [vmem:[%s484 + $0xf0] sm:$0xff] %v545
                  %v547 = vld [vmem:[%s483 + $0x174] sm:$0xff]
                  %548 = vst [vmem:[%s484 + $0xf8] sm:$0xff] %v547
                  %s549 = sadd.s32 1, %s482
                  %p550 = scmp.ge.s32.totalorder %s549, %s466
                  %s551 = scalar_select %p550, 0, %s549
                  %s552 = smul.u32 %s551, 8
                  %s553 = smul.u32 %s551, 8
                  %s554 = scalar_lea.vmem %s470, %s552
                  %s555 = scalar_lea.vmem %s473, %s553 [#allocation2]
                $region63: #{tpu_custom_call.1} parent=50 // loop_footer
                  %s479 = sadd.s32 %s477, 1
                $region64: #{tpu_custom_call.1} parent=50 // loop_footer_branch
                  %476 = sbr.rel target = $region60
                $region65: #{tpu_custom_call.1} parent=50 // loop_exit
                  _
              $region51: #{tpu_custom_call.1} parent=35 // pred_fallthru
                _
              %p556 = pneg %p313
              // Predicated region
              $region66: #{tpu_custom_call.1} parent=35 // pred_check
                _
              $region67: #{tpu_custom_call.1} parent=35 // pred_check_branch
                %558 = sbr.rel (%p313) target = $region69
              $region68: #{tpu_custom_call.1} parent=35 // pred_region
                %s559 = sand.u32 %s228, 7
                %s560 = ssub.s32 %s228, %s559
                %s561 = scalar_lea.vmem %s227, %s560
                %s562 = ssub.s32 %s228, %s559
                %s563 = scalar_lea.vmem %s219, %s562 [#allocation2]
                %s564 = sshrl.u32 %s228, 3
                %s565 = sshrl.u32 %s564, 1
                // While loop
                $region70: #{tpu_custom_call.1} parent=68 // loop_pre_header
                  _
                $region71: #{tpu_custom_call.1} parent=68 // loop_header
                  %s569 = sphi 0, %s571
                  %p570 = scmp.ge.s32.totalorder %s569, %s565
                  %s574 = sphi 0, %s707
                  %s575 = sphi %s227, %s710
                  %s576 = sphi %s219, %s711
                $region72: #{tpu_custom_call.1} parent=68 // loop_header_branch
                  %573 = sbr.rel (%p570) target = $region76
                $region73: #{tpu_custom_call.1} parent=68 // loop_body
                  %v577 = vld [vmem:[%s575] sm:$0xff]
                  %578 = vst [vmem:[%s576] sm:$0xff] %v577
                  %v579 = vld [vmem:[%s575 + $0x8] sm:$0xff]
                  %580 = vst [vmem:[%s576 + $0x8] sm:$0xff] %v579
                  %v581 = vld [vmem:[%s575 + $0xc] sm:$0xff]
                  %582 = vst [vmem:[%s576 + $0x8] sm:$0xff] %v581
                  %v583 = vld [vmem:[%s575 + $0x14] sm:$0xff]
                  %584 = vst [vmem:[%s576 + $0x10] sm:$0xff] %v583
                  %v585 = vld [vmem:[%s575 + $0x18] sm:$0xff]
                  %586 = vst [vmem:[%s576 + $0x10] sm:$0xff] %v585
                  %v587 = vld [vmem:[%s575 + $0x20] sm:$0xff]
                  %588 = vst [vmem:[%s576 + $0x18] sm:$0xff] %v587
                  %v589 = vld [vmem:[%s575 + $0x24] sm:$0xff]
                  %590 = vst [vmem:[%s576 + $0x18] sm:$0xff] %v589
                  %v591 = vld [vmem:[%s575 + $0x2c] sm:$0xff]
                  %592 = vst [vmem:[%s576 + $0x20] sm:$0xff] %v591
                  %v593 = vld [vmem:[%s575 + $0x30] sm:$0xff]
                  %594 = vst [vmem:[%s576 + $0x20] sm:$0xff] %v593
                  %v595 = vld [vmem:[%s575 + $0x38] sm:$0xff]
                  %596 = vst [vmem:[%s576 + $0x28] sm:$0xff] %v595
                  %v597 = vld [vmem:[%s575 + $0x3c] sm:$0xff]
                  %598 = vst [vmem:[%s576 + $0x28] sm:$0xff] %v597
                  %v599 = vld [vmem:[%s575 + $0x44] sm:$0xff]
                  %600 = vst [vmem:[%s576 + $0x30] sm:$0xff] %v599
                  %v601 = vld [vmem:[%s575 + $0x48] sm:$0xff]
                  %602 = vst [vmem:[%s576 + $0x30] sm:$0xff] %v601
                  %v603 = vld [vmem:[%s575 + $0x50] sm:$0xff]
                  %604 = vst [vmem:[%s576 + $0x38] sm:$0xff] %v603
                  %v605 = vld [vmem:[%s575 + $0x54] sm:$0xff]
                  %606 = vst [vmem:[%s576 + $0x38] sm:$0xff] %v605
                  %v607 = vld [vmem:[%s575 + $0x5c] sm:$0xff]
                  %608 = vst [vmem:[%s576 + $0x40] sm:$0xff] %v607
                  %v609 = vld [vmem:[%s575 + $0x60] sm:$0xff]
                  %610 = vst [vmem:[%s576 + $0x40] sm:$0xff] %v609
                  %v611 = vld [vmem:[%s575 + $0x68] sm:$0xff]
                  %612 = vst [vmem:[%s576 + $0x48] sm:$0xff] %v611
                  %v613 = vld [vmem:[%s575 + $0x6c] sm:$0xff]
                  %614 = vst [vmem:[%s576 + $0x48] sm:$0xff] %v613
                  %v615 = vld [vmem:[%s575 + $0x74] sm:$0xff]
                  %616 = vst [vmem:[%s576 + $0x50] sm:$0xff] %v615
                  %v617 = vld [vmem:[%s575 + $0x78] sm:$0xff]
                  %618 = vst [vmem:[%s576 + $0x50] sm:$0xff] %v617
                  %v619 = vld [vmem:[%s575 + $0x80] sm:$0xff]
                  %620 = vst [vmem:[%s576 + $0x58] sm:$0xff] %v619
                  %v621 = vld [vmem:[%s575 + $0x84] sm:$0xff]
                  %622 = vst [vmem:[%s576 + $0x58] sm:$0xff] %v621
                  %v623 = vld [vmem:[%s575 + $0x8c] sm:$0xff]
                  %624 = vst [vmem:[%s576 + $0x60] sm:$0xff] %v623
                  %v625 = vld [vmem:[%s575 + $0x90] sm:$0xff]
                  %626 = vst [vmem:[%s576 + $0x60] sm:$0xff] %v625
                  %v627 = vld [vmem:[%s575 + $0x98] sm:$0xff]
                  %628 = vst [vmem:[%s576 + $0x68] sm:$0xff] %v627
                  %v629 = vld [vmem:[%s575 + $0x9c] sm:$0xff]
                  %630 = vst [vmem:[%s576 + $0x68] sm:$0xff] %v629
                  %v631 = vld [vmem:[%s575 + $0xa4] sm:$0xff]
                  %632 = vst [vmem:[%s576 + $0x70] sm:$0xff] %v631
                  %v633 = vld [vmem:[%s575 + $0xa8] sm:$0xff]
                  %634 = vst [vmem:[%s576 + $0x70] sm:$0xff] %v633
                  %v635 = vld [vmem:[%s575 + $0xb0] sm:$0xff]
                  %636 = vst [vmem:[%s576 + $0x78] sm:$0xff] %v635
                  %v637 = vld [vmem:[%s575 + $0xb4] sm:$0xff]
                  %638 = vst [vmem:[%s576 + $0x78] sm:$0xff] %v637
                  %v639 = vld [vmem:[%s575 + $0xbc] sm:$0xff]
                  %640 = vst [vmem:[%s576 + $0x80] sm:$0xff] %v639
                  %v641 = vld [vmem:[%s575 + $0xc0] sm:$0xff]
                  %642 = vst [vmem:[%s576 + $0x80] sm:$0xff] %v641
                  %v643 = vld [vmem:[%s575 + $0xc8] sm:$0xff]
                  %644 = vst [vmem:[%s576 + $0x88] sm:$0xff] %v643
                  %v645 = vld [vmem:[%s575 + $0xcc] sm:$0xff]
                  %646 = vst [vmem:[%s576 + $0x88] sm:$0xff] %v645
                  %v647 = vld [vmem:[%s575 + $0xd4] sm:$0xff]
                  %648 = vst [vmem:[%s576 + $0x90] sm:$0xff] %v647
                  %v649 = vld [vmem:[%s575 + $0xd8] sm:$0xff]
                  %650 = vst [vmem:[%s576 + $0x90] sm:$0xff] %v649
                  %v651 = vld [vmem:[%s575 + $0xe0] sm:$0xff]
                  %652 = vst [vmem:[%s576 + $0x98] sm:$0xff] %v651
                  %v653 = vld [vmem:[%s575 + $0xe4] sm:$0xff]
                  %654 = vst [vmem:[%s576 + $0x98] sm:$0xff] %v653
                  %v655 = vld [vmem:[%s575 + $0xec] sm:$0xff]
                  %656 = vst [vmem:[%s576 + $0xa0] sm:$0xff] %v655
                  %v657 = vld [vmem:[%s575 + $0xf0] sm:$0xff]
                  %658 = vst [vmem:[%s576 + $0xa0] sm:$0xff] %v657
                  %v659 = vld [vmem:[%s575 + $0xf8] sm:$0xff]
                  %660 = vst [vmem:[%s576 + $0xa8] sm:$0xff] %v659
                  %v661 = vld [vmem:[%s575 + $0xfc] sm:$0xff]
                  %662 = vst [vmem:[%s576 + $0xa8] sm:$0xff] %v661
                  %v663 = vld [vmem:[%s575 + $0x104] sm:$0xff]
                  %664 = vst [vmem:[%s576 + $0xb0] sm:$0xff] %v663
                  %v665 = vld [vmem:[%s575 + $0x108] sm:$0xff]
                  %666 = vst [vmem:[%s576 + $0xb0] sm:$0xff] %v665
                  %v667 = vld [vmem:[%s575 + $0x110] sm:$0xff]
                  %668 = vst [vmem:[%s576 + $0xb8] sm:$0xff] %v667
                  %v669 = vld [vmem:[%s575 + $0x114] sm:$0xff]
                  %670 = vst [vmem:[%s576 + $0xb8] sm:$0xff] %v669
                  %v671 = vld [vmem:[%s575 + $0x11c] sm:$0xff]
                  %672 = vst [vmem:[%s576 + $0xc0] sm:$0xff] %v671
                  %v673 = vld [vmem:[%s575 + $0x120] sm:$0xff]
                  %674 = vst [vmem:[%s576 + $0xc0] sm:$0xff] %v673
                  %v675 = vld [vmem:[%s575 + $0x128] sm:$0xff]
                  %676 = vst [vmem:[%s576 + $0xc8] sm:$0xff] %v675
                  %v677 = vld [vmem:[%s575 + $0x12c] sm:$0xff]
                  %678 = vst [vmem:[%s576 + $0xc8] sm:$0xff] %v677
                  %v679 = vld [vmem:[%s575 + $0x134] sm:$0xff]
                  %680 = vst [vmem:[%s576 + $0xd0] sm:$0xff] %v679
                  %v681 = vld [vmem:[%s575 + $0x138] sm:$0xff]
                  %682 = vst [vmem:[%s576 + $0xd0] sm:$0xff] %v681
                  %v683 = vld [vmem:[%s575 + $0x140] sm:$0xff]
                  %684 = vst [vmem:[%s576 + $0xd8] sm:$0xff] %v683
                  %v685 = vld [vmem:[%s575 + $0x144] sm:$0xff]
                  %686 = vst [vmem:[%s576 + $0xd8] sm:$0xff] %v685
                  %v687 = vld [vmem:[%s575 + $0x14c] sm:$0xff]
                  %688 = vst [vmem:[%s576 + $0xe0] sm:$0xff] %v687
                  %v689 = vld [vmem:[%s575 + $0x150] sm:$0xff]
                  %690 = vst [vmem:[%s576 + $0xe0] sm:$0xff] %v689
                  %v691 = vld [vmem:[%s575 + $0x158] sm:$0xff]
                  %692 = vst [vmem:[%s576 + $0xe8] sm:$0xff] %v691
                  %v693 = vld [vmem:[%s575 + $0x15c] sm:$0xff]
                  %694 = vst [vmem:[%s576 + $0xe8] sm:$0xff] %v693
                  %v695 = vld [vmem:[%s575 + $0x164] sm:$0xff]
                  %696 = vst [vmem:[%s576 + $0xf0] sm:$0xff] %v695
                  %v697 = vld [vmem:[%s575 + $0x168] sm:$0xff]
                  %698 = vst [vmem:[%s576 + $0xf0] sm:$0xff] %v697
                  %v699 = vld [vmem:[%s575 + $0x170] sm:$0xff]
                  %700 = vst [vmem:[%s576 + $0xf8] sm:$0xff] %v699
                  %v701 = vld [vmem:[%s575 + $0x174] sm:$0xff]
                  %702 = vst [vmem:[%s576 + $0xf8] sm:$0xff] %v701
                  %v703 = vld [vmem:[%s575 + $0x17c] sm:$0xff]
                  %704 = vst [vmem:[%s576 + $0x100] sm:$0xff] %v703
                  %s705 = sadd.s32 1, %s574
                  %p706 = scmp.ge.s32.totalorder %s705, %s565
                  %s707 = scalar_select %p706, 0, %s705
                  %s708 = smul.u32 %s707, 16
                  %s709 = smul.u32 %s707, 16
                  %s710 = scalar_lea.vmem %s227, %s708
                  %s711 = scalar_lea.vmem %s219, %s709 [#allocation2]
                $region74: #{tpu_custom_call.1} parent=68 // loop_footer
                  %s571 = sadd.s32 %s569, 1
                $region75: #{tpu_custom_call.1} parent=68 // loop_footer_branch
                  %568 = sbr.rel target = $region71
                $region76: #{tpu_custom_call.1} parent=68 // loop_exit
                  _
                %s712 = sshrl.u32 %s564, 1
                %s713 = sand.u32 %s564, 1
                %s714 = smul.u32 %s712, 2
                %s715 = smul.u32 128, %s714
                %s716 = sshra.s32 %s715, 4
                %s717 = scalar_lea.vmem %s227, %s716
                %s718 = smul.u32 128, %s714
                %s719 = sshra.s32 %s718, 4
                %s720 = scalar_lea.vmem %s219, %s719 [#allocation2]
                // While loop
                $region77: #{tpu_custom_call.1} parent=68 // loop_pre_header
                  _
                $region78: #{tpu_custom_call.1} parent=68 // loop_header
                  %s724 = sphi 0, %s726
                  %p725 = scmp.ge.s32.totalorder %s724, %s713
                  %s729 = sphi 0, %s798
                  %s730 = sphi %s717, %s801
                  %s731 = sphi %s720, %s802
                $region79: #{tpu_custom_call.1} parent=68 // loop_header_branch
                  %728 = sbr.rel (%p725) target = $region83
                $region80: #{tpu_custom_call.1} parent=68 // loop_body
                  %v732 = vld [vmem:[%s730] sm:$0xff]
                  %733 = vst [vmem:[%s731] sm:$0xff] %v732
                  %v734 = vld [vmem:[%s730 + $0xc] sm:$0xff]
                  %735 = vst [vmem:[%s731 + $0x8] sm:$0xff] %v734
                  %v736 = vld [vmem:[%s730 + $0x18] sm:$0xff]
                  %737 = vst [vmem:[%s731 + $0x10] sm:$0xff] %v736
                  %v738 = vld [vmem:[%s730 + $0x24] sm:$0xff]
                  %739 = vst [vmem:[%s731 + $0x18] sm:$0xff] %v738
                  %v740 = vld [vmem:[%s730 + $0x30] sm:$0xff]
                  %741 = vst [vmem:[%s731 + $0x20] sm:$0xff] %v740
                  %v742 = vld [vmem:[%s730 + $0x3c] sm:$0xff]
                  %743 = vst [vmem:[%s731 + $0x28] sm:$0xff] %v742
                  %v744 = vld [vmem:[%s730 + $0x48] sm:$0xff]
                  %745 = vst [vmem:[%s731 + $0x30] sm:$0xff] %v744
                  %v746 = vld [vmem:[%s730 + $0x54] sm:$0xff]
                  %747 = vst [vmem:[%s731 + $0x38] sm:$0xff] %v746
                  %v748 = vld [vmem:[%s730 + $0x60] sm:$0xff]
                  %749 = vst [vmem:[%s731 + $0x40] sm:$0xff] %v748
                  %v750 = vld [vmem:[%s730 + $0x6c] sm:$0xff]
                  %751 = vst [vmem:[%s731 + $0x48] sm:$0xff] %v750
                  %v752 = vld [vmem:[%s730 + $0x78] sm:$0xff]
                  %753 = vst [vmem:[%s731 + $0x50] sm:$0xff] %v752
                  %v754 = vld [vmem:[%s730 + $0x84] sm:$0xff]
                  %755 = vst [vmem:[%s731 + $0x58] sm:$0xff] %v754
                  %v756 = vld [vmem:[%s730 + $0x90] sm:$0xff]
                  %757 = vst [vmem:[%s731 + $0x60] sm:$0xff] %v756
                  %v758 = vld [vmem:[%s730 + $0x9c] sm:$0xff]
                  %759 = vst [vmem:[%s731 + $0x68] sm:$0xff] %v758
                  %v760 = vld [vmem:[%s730 + $0xa8] sm:$0xff]
                  %761 = vst [vmem:[%s731 + $0x70] sm:$0xff] %v760
                  %v762 = vld [vmem:[%s730 + $0xb4] sm:$0xff]
                  %763 = vst [vmem:[%s731 + $0x78] sm:$0xff] %v762
                  %v764 = vld [vmem:[%s730 + $0xc0] sm:$0xff]
                  %765 = vst [vmem:[%s731 + $0x80] sm:$0xff] %v764
                  %v766 = vld [vmem:[%s730 + $0xcc] sm:$0xff]
                  %767 = vst [vmem:[%s731 + $0x88] sm:$0xff] %v766
                  %v768 = vld [vmem:[%s730 + $0xd8] sm:$0xff]
                  %769 = vst [vmem:[%s731 + $0x90] sm:$0xff] %v768
                  %v770 = vld [vmem:[%s730 + $0xe4] sm:$0xff]
                  %771 = vst [vmem:[%s731 + $0x98] sm:$0xff] %v770
                  %v772 = vld [vmem:[%s730 + $0xf0] sm:$0xff]
                  %773 = vst [vmem:[%s731 + $0xa0] sm:$0xff] %v772
                  %v774 = vld [vmem:[%s730 + $0xfc] sm:$0xff]
                  %775 = vst [vmem:[%s731 + $0xa8] sm:$0xff] %v774
                  %v776 = vld [vmem:[%s730 + $0x108] sm:$0xff]
                  %777 = vst [vmem:[%s731 + $0xb0] sm:$0xff] %v776
                  %v778 = vld [vmem:[%s730 + $0x114] sm:$0xff]
                  %779 = vst [vmem:[%s731 + $0xb8] sm:$0xff] %v778
                  %v780 = vld [vmem:[%s730 + $0x120] sm:$0xff]
                  %781 = vst [vmem:[%s731 + $0xc0] sm:$0xff] %v780
                  %v782 = vld [vmem:[%s730 + $0x12c] sm:$0xff]
                  %783 = vst [vmem:[%s731 + $0xc8] sm:$0xff] %v782
                  %v784 = vld [vmem:[%s730 + $0x138] sm:$0xff]
                  %785 = vst [vmem:[%s731 + $0xd0] sm:$0xff] %v784
                  %v786 = vld [vmem:[%s730 + $0x144] sm:$0xff]
                  %787 = vst [vmem:[%s731 + $0xd8] sm:$0xff] %v786
                  %v788 = vld [vmem:[%s730 + $0x150] sm:$0xff]
                  %789 = vst [vmem:[%s731 + $0xe0] sm:$0xff] %v788
                  %v790 = vld [vmem:[%s730 + $0x15c] sm:$0xff]
                  %791 = vst [vmem:[%s731 + $0xe8] sm:$0xff] %v790
                  %v792 = vld [vmem:[%s730 + $0x168] sm:$0xff]
                  %793 = vst [vmem:[%s731 + $0xf0] sm:$0xff] %v792
                  %v794 = vld [vmem:[%s730 + $0x174] sm:$0xff]
                  %795 = vst [vmem:[%s731 + $0xf8] sm:$0xff] %v794
                  %s796 = sadd.s32 1, %s729
                  %p797 = scmp.ge.s32.totalorder %s796, %s713
                  %s798 = scalar_select %p797, 0, %s796
                  %s799 = smul.u32 %s798, 8
                  %s800 = smul.u32 %s798, 8
                  %s801 = scalar_lea.vmem %s717, %s799
                  %s802 = scalar_lea.vmem %s720, %s800 [#allocation2]
                $region81: #{tpu_custom_call.1} parent=68 // loop_footer
                  %s726 = sadd.s32 %s724, 1
                $region82: #{tpu_custom_call.1} parent=68 // loop_footer_branch
                  %723 = sbr.rel target = $region78
                $region83: #{tpu_custom_call.1} parent=68 // loop_exit
                  _
                %s803 = sshllo.u32 0, %s559
                loop: start=0, step=1, limit=1
                $region84: #{tpu_custom_call.1} parent=68 // loop_pre_header
                  _
                $region85: #{tpu_custom_call.1} parent=68 // loop_header
                  %s805 = sphi 0, %s809
                  %p806 = scmp.ge.s32.totalorder %s805, 1
                  %s810 = sphi %s561, %s561
                  %s811 = sphi %s563, %s563
                $region86: #{tpu_custom_call.1} parent=68 // loop_header_branch
                  %808 = sbr.rel (%p806) target = $region90
                $region87: #{tpu_custom_call.1} parent=68 // loop_body
                  %v812 = vld [vmem:[%s810] sm:%s803]
                  %813 = vst [vmem:[%s811] sm:%s803] %v812
                  %v814 = vld [vmem:[%s810 + $0xc] sm:%s803]
                  %815 = vst [vmem:[%s811 + $0x8] sm:%s803] %v814
                  %v816 = vld [vmem:[%s810 + $0x18] sm:%s803]
                  %817 = vst [vmem:[%s811 + $0x10] sm:%s803] %v816
                  %v818 = vld [vmem:[%s810 + $0x24] sm:%s803]
                  %819 = vst [vmem:[%s811 + $0x18] sm:%s803] %v818
                  %v820 = vld [vmem:[%s810 + $0x30] sm:%s803]
                  %821 = vst [vmem:[%s811 + $0x20] sm:%s803] %v820
                  %v822 = vld [vmem:[%s810 + $0x3c] sm:%s803]
                  %823 = vst [vmem:[%s811 + $0x28] sm:%s803] %v822
                  %v824 = vld [vmem:[%s810 + $0x48] sm:%s803]
                  %825 = vst [vmem:[%s811 + $0x30] sm:%s803] %v824
                  %v826 = vld [vmem:[%s810 + $0x54] sm:%s803]
                  %827 = vst [vmem:[%s811 + $0x38] sm:%s803] %v826
                  %v828 = vld [vmem:[%s810 + $0x60] sm:%s803]
                  %829 = vst [vmem:[%s811 + $0x40] sm:%s803] %v828
                  %v830 = vld [vmem:[%s810 + $0x6c] sm:%s803]
                  %831 = vst [vmem:[%s811 + $0x48] sm:%s803] %v830
                  %v832 = vld [vmem:[%s810 + $0x78] sm:%s803]
                  %833 = vst [vmem:[%s811 + $0x50] sm:%s803] %v832
                  %v834 = vld [vmem:[%s810 + $0x84] sm:%s803]
                  %835 = vst [vmem:[%s811 + $0x58] sm:%s803] %v834
                  %v836 = vld [vmem:[%s810 + $0x90] sm:%s803]
                  %837 = vst [vmem:[%s811 + $0x60] sm:%s803] %v836
                  %v838 = vld [vmem:[%s810 + $0x9c] sm:%s803]
                  %839 = vst [vmem:[%s811 + $0x68] sm:%s803] %v838
                  %v840 = vld [vmem:[%s810 + $0xa8] sm:%s803]
                  %841 = vst [vmem:[%s811 + $0x70] sm:%s803] %v840
                  %v842 = vld [vmem:[%s810 + $0xb4] sm:%s803]
                  %843 = vst [vmem:[%s811 + $0x78] sm:%s803] %v842
                  %v844 = vld [vmem:[%s810 + $0xc0] sm:%s803]
                  %845 = vst [vmem:[%s811 + $0x80] sm:%s803] %v844
                  %v846 = vld [vmem:[%s810 + $0xcc] sm:%s803]
                  %847 = vst [vmem:[%s811 + $0x88] sm:%s803] %v846
                  %v848 = vld [vmem:[%s810 + $0xd8] sm:%s803]
                  %849 = vst [vmem:[%s811 + $0x90] sm:%s803] %v848
                  %v850 = vld [vmem:[%s810 + $0xe4] sm:%s803]
                  %851 = vst [vmem:[%s811 + $0x98] sm:%s803] %v850
                  %v852 = vld [vmem:[%s810 + $0xf0] sm:%s803]
                  %853 = vst [vmem:[%s811 + $0xa0] sm:%s803] %v852
                  %v854 = vld [vmem:[%s810 + $0xfc] sm:%s803]
                  %855 = vst [vmem:[%s811 + $0xa8] sm:%s803] %v854
                  %v856 = vld [vmem:[%s810 + $0x108] sm:%s803]
                  %857 = vst [vmem:[%s811 + $0xb0] sm:%s803] %v856
                  %v858 = vld [vmem:[%s810 + $0x114] sm:%s803]
                  %859 = vst [vmem:[%s811 + $0xb8] sm:%s803] %v858
                  %v860 = vld [vmem:[%s810 + $0x120] sm:%s803]
                  %861 = vst [vmem:[%s811 + $0xc0] sm:%s803] %v860
                  %v862 = vld [vmem:[%s810 + $0x12c] sm:%s803]
                  %863 = vst [vmem:[%s811 + $0xc8] sm:%s803] %v862
                  %v864 = vld [vmem:[%s810 + $0x138] sm:%s803]
                  %865 = vst [vmem:[%s811 + $0xd0] sm:%s803] %v864
                  %v866 = vld [vmem:[%s810 + $0x144] sm:%s803]
                  %867 = vst [vmem:[%s811 + $0xd8] sm:%s803] %v866
                  %v868 = vld [vmem:[%s810 + $0x150] sm:%s803]
                  %869 = vst [vmem:[%s811 + $0xe0] sm:%s803] %v868
                  %v870 = vld [vmem:[%s810 + $0x15c] sm:%s803]
                  %871 = vst [vmem:[%s811 + $0xe8] sm:%s803] %v870
                  %v872 = vld [vmem:[%s810 + $0x168] sm:%s803]
                  %873 = vst [vmem:[%s811 + $0xf0] sm:%s803] %v872
                  %v874 = vld [vmem:[%s810 + $0x174] sm:%s803]
                  %875 = vst [vmem:[%s811 + $0xf8] sm:%s803] %v874
                $region88: #{tpu_custom_call.1} parent=68 // loop_footer
                  %s809 = sadd.s32 1, %s805
                $region89: #{tpu_custom_call.1} parent=68 // loop_footer_branch
                  %804 = sbr.rel target = $region85
                $region90: #{tpu_custom_call.1} parent=68 // loop_exit
                  _
              $region69: #{tpu_custom_call.1} parent=35 // pred_fallthru
                _
            $region36: #{tpu_custom_call.1} parent=31 // pred_fallthru
              _
            // Predicated region
            $region37: #{tpu_custom_call.1} parent=31 // pred_check
              %p236 = pneg %p232
            $region38: #{tpu_custom_call.1} parent=31 // pred_check_branch
              %238 = sbr.rel (%p236) target = $region40
            $region39: #{tpu_custom_call.1} parent=31 // pred_region
              %s239 = sshllo.u32 0, %s228
              loop: start=0, step=1, limit=1
              $region41: #{tpu_custom_call.1} parent=39 // loop_pre_header
                _
              $region42: #{tpu_custom_call.1} parent=39 // loop_header
                %s241 = sphi 0, %s245
                %p242 = scmp.ge.s32.totalorder %s241, 1
                %s246 = sphi %s227, %s227
                %s247 = sphi %s219, %s219
              $region43: #{tpu_custom_call.1} parent=39 // loop_header_branch
                %244 = sbr.rel (%p242) target = $region47
              $region44: #{tpu_custom_call.1} parent=39 // loop_body
                %v248 = vld [vmem:[%s246] sm:%s239]
                %249 = vst [vmem:[%s247] sm:%s239] %v248
                %v250 = vld [vmem:[%s246 + $0xc] sm:%s239]
                %251 = vst [vmem:[%s247 + $0x8] sm:%s239] %v250
                %v252 = vld [vmem:[%s246 + $0x18] sm:%s239]
                %253 = vst [vmem:[%s247 + $0x10] sm:%s239] %v252
                %v254 = vld [vmem:[%s246 + $0x24] sm:%s239]
                %255 = vst [vmem:[%s247 + $0x18] sm:%s239] %v254
                %v256 = vld [vmem:[%s246 + $0x30] sm:%s239]
                %257 = vst [vmem:[%s247 + $0x20] sm:%s239] %v256
                %v258 = vld [vmem:[%s246 + $0x3c] sm:%s239]
                %259 = vst [vmem:[%s247 + $0x28] sm:%s239] %v258
                %v260 = vld [vmem:[%s246 + $0x48] sm:%s239]
                %261 = vst [vmem:[%s247 + $0x30] sm:%s239] %v260
                %v262 = vld [vmem:[%s246 + $0x54] sm:%s239]
                %263 = vst [vmem:[%s247 + $0x38] sm:%s239] %v262
                %v264 = vld [vmem:[%s246 + $0x60] sm:%s239]
                %265 = vst [vmem:[%s247 + $0x40] sm:%s239] %v264
                %v266 = vld [vmem:[%s246 + $0x6c] sm:%s239]
                %267 = vst [vmem:[%s247 + $0x48] sm:%s239] %v266
                %v268 = vld [vmem:[%s246 + $0x78] sm:%s239]
                %269 = vst [vmem:[%s247 + $0x50] sm:%s239] %v268
                %v270 = vld [vmem:[%s246 + $0x84] sm:%s239]
                %271 = vst [vmem:[%s247 + $0x58] sm:%s239] %v270
                %v272 = vld [vmem:[%s246 + $0x90] sm:%s239]
                %273 = vst [vmem:[%s247 + $0x60] sm:%s239] %v272
                %v274 = vld [vmem:[%s246 + $0x9c] sm:%s239]
                %275 = vst [vmem:[%s247 + $0x68] sm:%s239] %v274
                %v276 = vld [vmem:[%s246 + $0xa8] sm:%s239]
                %277 = vst [vmem:[%s247 + $0x70] sm:%s239] %v276
                %v278 = vld [vmem:[%s246 + $0xb4] sm:%s239]
                %279 = vst [vmem:[%s247 + $0x78] sm:%s239] %v278
                %v280 = vld [vmem:[%s246 + $0xc0] sm:%s239]
                %281 = vst [vmem:[%s247 + $0x80] sm:%s239] %v280
                %v282 = vld [vmem:[%s246 + $0xcc] sm:%s239]
                %283 = vst [vmem:[%s247 + $0x88] sm:%s239] %v282
                %v284 = vld [vmem:[%s246 + $0xd8] sm:%s239]
                %285 = vst [vmem:[%s247 + $0x90] sm:%s239] %v284
                %v286 = vld [vmem:[%s246 + $0xe4] sm:%s239]
                %287 = vst [vmem:[%s247 + $0x98] sm:%s239] %v286
                %v288 = vld [vmem:[%s246 + $0xf0] sm:%s239]
                %289 = vst [vmem:[%s247 + $0xa0] sm:%s239] %v288
                %v290 = vld [vmem:[%s246 + $0xfc] sm:%s239]
                %291 = vst [vmem:[%s247 + $0xa8] sm:%s239] %v290
                %v292 = vld [vmem:[%s246 + $0x108] sm:%s239]
                %293 = vst [vmem:[%s247 + $0xb0] sm:%s239] %v292
                %v294 = vld [vmem:[%s246 + $0x114] sm:%s239]
                %295 = vst [vmem:[%s247 + $0xb8] sm:%s239] %v294
                %v296 = vld [vmem:[%s246 + $0x120] sm:%s239]
                %297 = vst [vmem:[%s247 + $0xc0] sm:%s239] %v296
                %v298 = vld [vmem:[%s246 + $0x12c] sm:%s239]
                %299 = vst [vmem:[%s247 + $0xc8] sm:%s239] %v298
                %v300 = vld [vmem:[%s246 + $0x138] sm:%s239]
                %301 = vst [vmem:[%s247 + $0xd0] sm:%s239] %v300
                %v302 = vld [vmem:[%s246 + $0x144] sm:%s239]
                %303 = vst [vmem:[%s247 + $0xd8] sm:%s239] %v302
                %v304 = vld [vmem:[%s246 + $0x150] sm:%s239]
                %305 = vst [vmem:[%s247 + $0xe0] sm:%s239] %v304
                %v306 = vld [vmem:[%s246 + $0x15c] sm:%s239]
                %307 = vst [vmem:[%s247 + $0xe8] sm:%s239] %v306
                %v308 = vld [vmem:[%s246 + $0x168] sm:%s239]
                %309 = vst [vmem:[%s247 + $0xf0] sm:%s239] %v308
                %v310 = vld [vmem:[%s246 + $0x174] sm:%s239]
                %311 = vst [vmem:[%s247 + $0xf8] sm:%s239] %v310
              $region45: #{tpu_custom_call.1} parent=39 // loop_footer
                %s245 = sadd.s32 1, %s241
              $region46: #{tpu_custom_call.1} parent=39 // loop_footer_branch
                %240 = sbr.rel target = $region42
              $region47: #{tpu_custom_call.1} parent=39 // loop_exit
                _
            $region40: #{tpu_custom_call.1} parent=31 // pred_fallthru
              _
          $region32: #{tpu_custom_call.1} parent=27 // pred_fallthru
            _
          %876 = vnop
        $region28: #{tpu_custom_call.1} parent=15 // pred_fallthru
          _
        // Predicated region
        $region91: #{tpu_custom_call.1} parent=15 // pred_check
          %p877 = pneg %p123
        $region92: #{tpu_custom_call.1} parent=15 // pred_check_branch
          %879 = sbr.rel (%p877) target = $region94
        $region93: #{tpu_custom_call.1} parent=15 // pred_region
          %s880 = smul.u32 2, %s20
          %s881 = ssub.s32 3, %s880
          %p882 = scmp.lt.s32.totalorder %s881, 2
          %s883 = scalar_select %p882, %s881, 2
          %s884 = smul.u32 16, %s883
          %p885 = scmp.lt.s32.totalorder %s880, 2
          %s886 = scalar_select %p885, %s880, 2
          %s887 = scalar_lea.vmem %s3, %s886
          %s888 = smul.u32 2, %s20
          %s889 = ssub.s32 3, %s888
          %p890 = scmp.lt.s32.totalorder %s889, 2
          %s891 = scalar_select %p890, %s889, 2
          %s892 = smul.u32 16, %s891
        $region94: #{tpu_custom_call.1} parent=15 // pred_fallthru
          _
      $region16: #{tpu_custom_call.1} parent=5 // pred_fallthru
        _
      %p893 = scmp.le.s32.totalorder 1, %s13
      %p894 = scmp.lt.s32.totalorder %s13, 5
      %p895 = pnand %p893, %p894
      %p896 = pneg %p895
      // Predicated region
      $region95: #{tpu_custom_call.1} parent=5 // pred_check
        _
      $region96: #{tpu_custom_call.1} parent=5 // pred_check_branch
        %898 = sbr.rel (%p895) target = $region98
      $region97: #{tpu_custom_call.1} parent=5 // pred_region
        %s899 = ssub.s32 %s13, 1
        %s900 = sand.u32 %s90, 1
        %s901 = sand.u32 %s90, 1
        %s902 = smul.addr %s901, 256
        %s903 = scalar_lea.vmem [#allocation2], %s902
        // Predicated region
        $region99: #{tpu_custom_call.1} parent=97 // pred_check
          %p904 = pneg %p103
        $region100: #{tpu_custom_call.1} parent=97 // pred_check_branch
          %906 = sbr.rel (%p904) target = $region102
        $region101: #{tpu_custom_call.1} parent=97 // pred_region
          _
        $region102: #{tpu_custom_call.1} parent=97 // pred_fallthru
          _
        %s907 = smul.u32 2, %s23
        %s908 = ssub.s32 3, %s907
        %p909 = scmp.lt.s32.totalorder %s908, 2
        %s910 = scalar_select %p909, %s908, 2
        %s911 = smul.u32 64, %s910
        %s912 = smul.u32 %s911, 2
        %p913 = scmp.lt.s32.totalorder %s907, 2
        %s914 = scalar_select %p913, %s907, 2
        %s915 = smul.addr %s914, 2
        %s916 = smul.addr %s915, 4
        %s917 = scalar_lea.vmem %s0, %s916
        %p918 = pneg %p51
        %p919 = pneg %p48
        %s920 = smul.u32 2, %s23
        %s921 = ssub.s32 3, %s920
        %p922 = scmp.lt.s32.totalorder %s921, 2
        %s923 = scalar_select %p922, %s921, 2
        %s924 = smul.u32 128, %s923
        %p925 = scmp.lt.s32.totalorder %s920, 2
        %s926 = scalar_select %p925, %s920, 2
        %s927 = smul.addr %s926, 8
        %s928 = scalar_lea.vmem %s1, %s927
        %p929 = pneg %p77
        %p930 = pneg %p74
        %s931 = sand.u32 %s90, 1
        %s932 = sand.u32 %s90, 1
        %s933 = smul.addr %s932, 256
        %s934 = scalar_lea.vmem [#allocation2], %s933
        %p935 = pneg %p103
        %p936 = pneg %p100
        %s937 = smul.u32 2, %s22
        %s938 = ssub.s32 3, %s937
        %p939 = scmp.lt.s32.totalorder %s938, 2
        %s940 = scalar_select %p939, %s938, 2
        %s941 = smul.u32 16, %s940
        %p942 = scmp.lt.s32.totalorder %s937, 2
        %s943 = scalar_select %p942, %s937, 2
        %s944 = scalar_lea.vmem %s3, %s943
        %p945 = pneg %p129
        %p946 = pneg %p126
        %p947 = pneg %p157
        %p948 = pneg %p154
        %s949 = sand.u32 %s144, 1
        %s950 = scalar_lea.sflag [#allocation4], %s949
        %s951 = sand.u32 %s144, 1
        %s952 = smul.addr %s951, 32
        %s953 = scalar_lea.vmem [#allocation3], %s952
        %s954 = smul.u32 2, %s23
        %s955 = ssub.s32 3, %s954
        %p956 = scmp.lt.s32.totalorder %s955, 2
        %s957 = scalar_select %p956, %s955, 2
        %s958 = smul.u32 64, %s957
        %s959 = smul.u32 %s958, 2
        %p960 = scmp.lt.s32.totalorder %s954, 2
        %s961 = scalar_select %p960, %s954, 2
        %s962 = smul.addr %s961, 2
        %s963 = smul.addr %s962, 4
        %s964 = scalar_lea.vmem %s0, %s963
        %s965 = smul.u32 2, %s23
        %s966 = ssub.s32 3, %s965
        %p967 = scmp.lt.s32.totalorder %s966, 2
        %s968 = scalar_select %p967, %s966, 2
        %s969 = smul.u32 64, %s968
        %s970 = smul.u32 %s969, 2
        %s971 = smul.u32 2, %s23
        %s972 = ssub.s32 3, %s971
        %p973 = scmp.lt.s32.totalorder %s972, 2
        %s974 = scalar_select %p973, %s972, 2
        %s975 = smul.u32 128, %s974
        %p976 = scmp.lt.s32.totalorder %s971, 2
        %s977 = scalar_select %p976, %s971, 2
        %s978 = smul.addr %s977, 8
        %s979 = scalar_lea.vmem %s1, %s978
        %s980 = smul.u32 2, %s23
        %s981 = ssub.s32 3, %s980
        %p982 = scmp.lt.s32.totalorder %s981, 2
        %s983 = scalar_select %p982, %s981, 2
        %s984 = smul.u32 128, %s983
        %s985 = smul.u32 2, %s22
        %s986 = ssub.s32 3, %s985
        %p987 = scmp.lt.s32.totalorder %s986, 2
        %s988 = scalar_select %p987, %s986, 2
        %s989 = smul.u32 2048, %s988
        %s990 = smul.u32 2, %s22
        %s991 = ssub.s32 3, %s990
        %p992 = scmp.lt.s32.totalorder %s991, 2
        %s993 = scalar_select %p992, %s991, 2
        %s994 = smul.u32 16, %s993
        %p995 = scmp.lt.s32.totalorder %s990, 2
        %s996 = scalar_select %p995, %s990, 2
        %s997 = scalar_lea.vmem %s3, %s996
        %s998 = smul.u32 2, %s22
        %s999 = ssub.s32 3, %s998
        %p1000 = scmp.lt.s32.totalorder %s999, 2
        %s1001 = scalar_select %p1000, %s999, 2
        %s1002 = smul.u32 16, %s1001
        %s1003 = smul.u32 2, %s23
        %s1004 = smul.u32 2, %s22
        %s1005 = ssub.s32 3, %s1003
        %p1006 = scmp.lt.s32.totalorder %s1005, 2
        %s1007 = scalar_select %p1006, %s1005, 2
        %s1008 = smul.u32 128, %s1007
        %s1009 = ssub.s32 3, %s1004
        %p1010 = scmp.lt.s32.totalorder %s1009, 2
        %s1011 = scalar_select %p1010, %s1009, 2
        %s1012 = smul.u32 %s1008, %s1011
        %v1013 = vld [vmem:[%s964] sm:$0xff]
        %v1014 = vld [vmem:[%s964 + $0x8] sm:$0xff]
        %v1015 = vld [vmem:[%s903] sm:$0xff]
        %v1016 = vld [vmem:[%s903 + $0x8] sm:$0xff]
        %v1017 = vld [vmem:[%s903 + $0x10] sm:$0xff]
        %v1018 = vld [vmem:[%s903 + $0x18] sm:$0xff]
        %v1019 = vld [vmem:[%s903 + $0x20] sm:$0xff]
        %v1020 = vld [vmem:[%s903 + $0x28] sm:$0xff]
        %v1021 = vld [vmem:[%s903 + $0x30] sm:$0xff]
        %v1022 = vld [vmem:[%s903 + $0x38] sm:$0xff]
        %v1023 = vld [vmem:[%s903 + $0x40] sm:$0xff]
        %v1024 = vld [vmem:[%s903 + $0x48] sm:$0xff]
        %v1025 = vld [vmem:[%s903 + $0x50] sm:$0xff]
        %v1026 = vld [vmem:[%s903 + $0x58] sm:$0xff]
        %v1027 = vld [vmem:[%s903 + $0x60] sm:$0xff]
        %v1028 = vld [vmem:[%s903 + $0x68] sm:$0xff]
        %v1029 = vld [vmem:[%s903 + $0x70] sm:$0xff]
        %v1030 = vld [vmem:[%s903 + $0x78] sm:$0xff]
        %v1031 = vld [vmem:[%s903 + $0x80] sm:$0xff]
        %v1032 = vld [vmem:[%s903 + $0x88] sm:$0xff]
        %v1033 = vld [vmem:[%s903 + $0x90] sm:$0xff]
        %v1034 = vld [vmem:[%s903 + $0x98] sm:$0xff]
        %v1035 = vld [vmem:[%s903 + $0xa0] sm:$0xff]
        %v1036 = vld [vmem:[%s903 + $0xa8] sm:$0xff]
        %v1037 = vld [vmem:[%s903 + $0xb0] sm:$0xff]
        %v1038 = vld [vmem:[%s903 + $0xb8] sm:$0xff]
        %v1039 = vld [vmem:[%s903 + $0xc0] sm:$0xff]
        %v1040 = vld [vmem:[%s903 + $0xc8] sm:$0xff]
        %v1041 = vld [vmem:[%s903 + $0xd0] sm:$0xff]
        %v1042 = vld [vmem:[%s903 + $0xd8] sm:$0xff]
        %v1043 = vld [vmem:[%s903 + $0xe0] sm:$0xff]
        %v1044 = vld [vmem:[%s903 + $0xe8] sm:$0xff]
        %v1045 = vld [vmem:[%s903 + $0xf0] sm:$0xff]
        %v1046 = vld [vmem:[%s903 + $0xf8] sm:$0xff]
        %v1049 = vunpack.c.l.b16 %v1013
        %v1050 = vunpack.c.h.b16 %v1013
        %v1051 = vunpack.c.l.b16 %v1014
        %v1052 = vunpack.c.h.b16 %v1014
        %v1053 = vpack.c.b16 %v1051, %v1049
        %v1054 = vpack.c.b16 %v1052, %v1050
        %v1089 = vunpack.c.l.b16 %v1015
        %v1090 = vunpack.c.h.b16 %v1015
        %v1091 = vunpack.c.l.b16 %v1016
        %v1092 = vunpack.c.h.b16 %v1016
        %v1093 = vunpack.c.l.b16 %v1017
        %v1094 = vunpack.c.h.b16 %v1017
        %v1095 = vunpack.c.l.b16 %v1018
        %v1096 = vunpack.c.h.b16 %v1018
        %v1097 = vunpack.c.l.b16 %v1019
        %v1098 = vunpack.c.h.b16 %v1019
        %v1099 = vunpack.c.l.b16 %v1020
        %v1100 = vunpack.c.h.b16 %v1020
        %v1101 = vunpack.c.l.b16 %v1021
        %v1102 = vunpack.c.h.b16 %v1021
        %v1103 = vunpack.c.l.b16 %v1022
        %v1104 = vunpack.c.h.b16 %v1022
        %v1105 = vunpack.c.l.b16 %v1023
        %v1106 = vunpack.c.h.b16 %v1023
        %v1107 = vunpack.c.l.b16 %v1024
        %v1108 = vunpack.c.h.b16 %v1024
        %v1109 = vunpack.c.l.b16 %v1025
        %v1110 = vunpack.c.h.b16 %v1025
        %v1111 = vunpack.c.l.b16 %v1026
        %v1112 = vunpack.c.h.b16 %v1026
        %v1113 = vunpack.c.l.b16 %v1027
        %v1114 = vunpack.c.h.b16 %v1027
        %v1115 = vunpack.c.l.b16 %v1028
        %v1116 = vunpack.c.h.b16 %v1028
        %v1117 = vunpack.c.l.b16 %v1029
        %v1118 = vunpack.c.h.b16 %v1029
        %v1119 = vunpack.c.l.b16 %v1030
        %v1120 = vunpack.c.h.b16 %v1030
        %v1121 = vunpack.c.l.b16 %v1031
        %v1122 = vunpack.c.h.b16 %v1031
        %v1123 = vunpack.c.l.b16 %v1032
        %v1124 = vunpack.c.h.b16 %v1032
        %v1125 = vunpack.c.l.b16 %v1033
        %v1126 = vunpack.c.h.b16 %v1033
        %v1127 = vunpack.c.l.b16 %v1034
        %v1128 = vunpack.c.h.b16 %v1034
        %v1129 = vunpack.c.l.b16 %v1035
        %v1130 = vunpack.c.h.b16 %v1035
        %v1131 = vunpack.c.l.b16 %v1036
        %v1132 = vunpack.c.h.b16 %v1036
        %v1133 = vunpack.c.l.b16 %v1037
        %v1134 = vunpack.c.h.b16 %v1037
        %v1135 = vunpack.c.l.b16 %v1038
        %v1136 = vunpack.c.h.b16 %v1038
        %v1137 = vunpack.c.l.b16 %v1039
        %v1138 = vunpack.c.h.b16 %v1039
        %v1139 = vunpack.c.l.b16 %v1040
        %v1140 = vunpack.c.h.b16 %v1040
        %v1141 = vunpack.c.l.b16 %v1041
        %v1142 = vunpack.c.h.b16 %v1041
        %v1143 = vunpack.c.l.b16 %v1042
        %v1144 = vunpack.c.h.b16 %v1042
        %v1145 = vunpack.c.l.b16 %v1043
        %v1146 = vunpack.c.h.b16 %v1043
        %v1147 = vunpack.c.l.b16 %v1044
        %v1148 = vunpack.c.h.b16 %v1044
        %v1149 = vunpack.c.l.b16 %v1045
        %v1150 = vunpack.c.h.b16 %v1045
        %v1151 = vunpack.c.l.b16 %v1046
        %v1152 = vunpack.c.h.b16 %v1046
        %v1153 = vpack.c.b16 %v1091, %v1089
        %v1154 = vpack.c.b16 %v1092, %v1090
        %v1155 = vpack.c.b16 %v1095, %v1093
        %v1156 = vpack.c.b16 %v1096, %v1094
        %v1157 = vpack.c.b16 %v1099, %v1097
        %v1158 = vpack.c.b16 %v1100, %v1098
        %v1159 = vpack.c.b16 %v1103, %v1101
        %v1160 = vpack.c.b16 %v1104, %v1102
        %v1161 = vpack.c.b16 %v1107, %v1105
        %v1162 = vpack.c.b16 %v1108, %v1106
        %v1163 = vpack.c.b16 %v1111, %v1109
        %v1164 = vpack.c.b16 %v1112, %v1110
        %v1165 = vpack.c.b16 %v1115, %v1113
        %v1166 = vpack.c.b16 %v1116, %v1114
        %v1167 = vpack.c.b16 %v1119, %v1117
        %v1168 = vpack.c.b16 %v1120, %v1118
        %v1169 = vpack.c.b16 %v1123, %v1121
        %v1170 = vpack.c.b16 %v1124, %v1122
        %v1171 = vpack.c.b16 %v1127, %v1125
        %v1172 = vpack.c.b16 %v1128, %v1126
        %v1173 = vpack.c.b16 %v1131, %v1129
        %v1174 = vpack.c.b16 %v1132, %v1130
        %v1175 = vpack.c.b16 %v1135, %v1133
        %v1176 = vpack.c.b16 %v1136, %v1134
        %v1177 = vpack.c.b16 %v1139, %v1137
        %v1178 = vpack.c.b16 %v1140, %v1138
        %v1179 = vpack.c.b16 %v1143, %v1141
        %v1180 = vpack.c.b16 %v1144, %v1142
        %v1181 = vpack.c.b16 %v1147, %v1145
        %v1182 = vpack.c.b16 %v1148, %v1146
        %v1183 = vpack.c.b16 %v1151, %v1149
        %v1184 = vpack.c.b16 %v1152, %v1150
        %1217 = vmatprep.subr.bf16.mxu0 %v1154
        %1218 = vmatpush1.bf16.msra.mxu0 %v1153
        %1219 = vmatprep.subr.bf16.mxu0 %v1156
        %1220 = vmatpush1.bf16.msra.mxu0 %v1155
        %1221 = vmatprep.subr.bf16.mxu0 %v1158
        %1222 = vmatpush1.bf16.msra.mxu0 %v1157
        %1223 = vmatprep.subr.bf16.mxu0 %v1160
        %1224 = vmatpush1.bf16.msra.mxu0 %v1159
        %1225 = vmatprep.subr.bf16.mxu0 %v1162
        %1226 = vmatpush1.bf16.msra.mxu0 %v1161
        %1227 = vmatprep.subr.bf16.mxu0 %v1164
        %1228 = vmatpush1.bf16.msra.mxu0 %v1163
        %1229 = vmatprep.subr.bf16.mxu0 %v1166
        %1230 = vmatpush1.bf16.msra.mxu0 %v1165
        %1231 = vmatprep.subr.bf16.mxu0 %v1168
        %1232 = vmatpush1.bf16.msra.mxu0 %v1167
        %1233 = vmatprep.subr.bf16.mxu0 %v1170
        %1234 = vmatpush1.bf16.msra.mxu0 %v1169
        %1235 = vmatprep.subr.bf16.mxu0 %v1172
        %1236 = vmatpush1.bf16.msra.mxu0 %v1171
        %1237 = vmatprep.subr.bf16.mxu0 %v1174
        %1238 = vmatpush1.bf16.msra.mxu0 %v1173
        %1239 = vmatprep.subr.bf16.mxu0 %v1176
        %1240 = vmatpush1.bf16.msra.mxu0 %v1175
        %1241 = vmatprep.subr.bf16.mxu0 %v1178
        %1242 = vmatpush1.bf16.msra.mxu0 %v1177
        %1243 = vmatprep.subr.bf16.mxu0 %v1180
        %1244 = vmatpush1.bf16.msra.mxu0 %v1179
        %1245 = vmatprep.subr.bf16.mxu0 %v1182
        %1246 = vmatpush1.bf16.msra.mxu0 %v1181
        %1247 = vmatprep.subr.bf16.mxu0 %v1184
        %1248 = vmatpush1.bf16.msra.mxu0 %v1183
        %1249 = vmatprep.mubr.bf16.mxu0 %v1054
        %1250 = vmatmul.mubr.bf16.gmra.mrb[0].mxu0 %v1053
        %v1251 = vpop.f32.mrb[0].mxu0
        %v1252 = vadd.f32 0.0, %v1251
        %v1253 = vpop.f32.mrb[0].mxu0
        %v1254 = vadd.f32 0.0, %v1253
        %v1255 = vpop.f32.mrb[0].mxu0
        %v1256 = vadd.f32 0.0, %v1255
        %v1257 = vpop.f32.mrb[0].mxu0
        %v1258 = vadd.f32 0.0, %v1257
        %1259 = vdwg.mxu0
        %v1260 = vld [vmem:[%s979] sm:$0xff]
        %v1261 = vld [vmem:[%s979 + $0x8] sm:$0xff]
        %1263 = vset.pattern.permute.xlu0 0
        %1264 = vperm.xlu0 %1263, %v1260
        %v1265 = vpop.permute.xlu0 %1264
        %1268 = vset.pattern.permute.xlu0 0
        %1269 = vperm.xlu0 %1268, %v1261
        %v1270 = vpop.permute.xlu0 %1269
        %v1272 = vmul.f32 %v1252, %v1265
        %v1273 = vmul.f32 %v1254, %v1265
        %v1274 = vmul.f32 %v1256, %v1270
        %v1275 = vmul.f32 %v1258, %v1270
        %v1276 = vld [vmem:[%s997] sm:$0x3]
        %v1278 = vlaneseq
        %v1279 = vshrl.u32 %v1278, 7
        %v1280 = vsub.s32 0, %v1279
        %v1281 = vrot.slane %v1276, %v1280
        %v1282 = vlaneseq
        %v1283 = vshrl.u32 %v1282, 7
        %v1284 = vsub.s32 1, %v1283
        %v1285 = vrot.slane %v1276, %v1284
        %v1288 = vadd.f32 %v1272, %v1281
        %v1289 = vadd.f32 %v1273, %v1285
        %v1290 = vadd.f32 %v1274, %v1281
        %v1291 = vadd.f32 %v1275, %v1285
        %v1292 = vmax.f32 %v1288, 0.0
        %v1293 = vmax.f32 %v1289, 0.0
        %v1294 = vmax.f32 %v1290, 0.0
        %v1295 = vmax.f32 %v1291, 0.0
        %1296 = vst [vmem:[%s953] sm:$0xff] %v1292
        %1297 = vst [vmem:[%s953 + $0x8] sm:$0xff] %v1293
        %1298 = vst [vmem:[%s953 + $0x10] sm:$0xff] %v1294
        %1299 = vst [vmem:[%s953 + $0x18] sm:$0xff] %v1295
        %s1300 = sand.u32 %s144, 1
        %s1301 = scalar_lea.sflag [#allocation4], %s1300
        %s1302 = sand.u32 %s144, 1
        %s1303 = smul.addr %s1302, 32
        %s1304 = scalar_lea.vmem [#allocation3], %s1303
        // Predicated region
        $region103: #{tpu_custom_call.1} parent=97 // pred_check
          %p1305 = pneg %p154
        $region104: #{tpu_custom_call.1} parent=97 // pred_check_branch
          %1307 = sbr.rel (%p1305) target = $region106
        $region105: #{tpu_custom_call.1} parent=97 // pred_region
          %s1308 = smul.u32 2, %s23
          %s1309 = smul.u32 2, %s22
          %s1310 = ssub.s32 3, %s1308
          %p1311 = scmp.lt.s32.totalorder %s1310, 2
          %s1312 = scalar_select %p1311, %s1310, 2
          %s1313 = smul.u32 128, %s1312
          %s1314 = ssub.s32 3, %s1309
          %p1315 = scmp.lt.s32.totalorder %s1314, 2
          %s1316 = scalar_select %p1315, %s1314, 2
          %s1317 = smul.u32 %s1313, %s1316
          %s1319 = ssub.s32 512, %s1317
          %1320 = vsyncadd %s1301, %s1319
          %p1321 = scmp.ne.s32.totalorder 0, %s1317
          %s1322 = smul.addr %s1308, 3
          %s1323 = sadd.s32 %s1309, %s1322
          %s1324 = smul.addr %s1323, 128
          %s1325 = scalar_lea.hbm %s4, %s1324
          %s1326 = smul.u32 %s1316, 8
          %s1327 = smul.u32 %s1326, %s1312
          %s1328 = sshll.u32 %s1304, 4
          %s1329 = int_to_ptr.vmem [resolvable:$true] %s1328
          %s1330 = sshll.u32 %s1327, 4
          %1334 = dma.vmem_to_hbm [thread:$0]  (%p1321), %s1329, %s1330, %s1325, %s1301, 256, 384, %s1326
        $region106: #{tpu_custom_call.1} parent=97 // pred_fallthru
          _
      $region98: #{tpu_custom_call.1} parent=5 // pred_fallthru
        _
      %p1335 = scmp.le.s32.totalorder 2, %s13
      // Predicated region
      $region107: #{tpu_custom_call.1} parent=5 // pred_check
        %p1336 = pneg %p1335
      $region108: #{tpu_custom_call.1} parent=5 // pred_check_branch
        %1338 = sbr.rel (%p1336) target = $region110
      $region109: #{tpu_custom_call.1} parent=5 // pred_region
        %s1339 = ssub.s32 %s13, 2
        // Predicated region
        $region111: #{tpu_custom_call.1} parent=109 // pred_check
          %p1340 = pneg %p160
        $region112: #{tpu_custom_call.1} parent=109 // pred_check_branch
          %1342 = sbr.rel (%p1340) target = $region114
        $region113: #{tpu_custom_call.1} parent=109 // pred_region
          %s1343 = sand.u32 %s145, 1
          %s1344 = scalar_lea.sflag [#allocation4], %s1343
          %s1345 = sand.u32 %s145, 1
          %s1346 = smul.addr %s1345, 32
          %s1347 = scalar_lea.vmem [#allocation3], %s1346
          %1348 = dma.done %s1344, 512
        $region114: #{tpu_custom_call.1} parent=109 // pred_fallthru
          _
      $region110: #{tpu_custom_call.1} parent=5 // pred_fallthru
        _
    $region6: #{tpu_custom_call.1} parent=1 // loop_footer
      %s17 = sadd.s32 1, %s13
    $region7: #{tpu_custom_call.1} parent=1 // loop_footer_branch
      %12 = sbr.rel target = $region3
    $region8: #{tpu_custom_call.1} parent=1 // loop_exit
      _
    %1349 = vsyncpa [#allocation4], 1
    %s1350 = scalar_lea.sflag [#allocation4], 1
    %1351 = vsyncpa %s1350, 1

</llo_original>
